<compile_context>
chip_gen: v7x
topology: tpu7x:2x2x1
jax: 0.10.0
libtpu: 0.0.40
codegen_flags: <defaults>
</compile_context>

<pallas_src>
import functools

import jax
import jax.numpy as jnp
from jax import lax
from jax.experimental import pallas as pl
from jax.experimental.pallas import tpu as pltpu


def _self_attention_kernel(n_valid, tk, need_mask,
                           xq_ref, xk_ref, mt_ref, wkbq_ref, wv_ref, bv_ref,
                           gamma_ref, o_ref, qm_ref, m_ref, l_ref, acc_ref):
    ki = pl.program_id(2)

    @pl.when(ki == 0)
    def _init():
        xq_b = xq_ref[0].astype(jnp.bfloat16)                 # (C, TQ)
        # Folded query-side activation:
        #   qm[c, i] = sum_c' (Wk Wq^T)[c, c'] * x[c', i] + (Wk bq)[c]
        # so that   energy[i, j] = sum_c qm[c, i] * x[c, j]
        # (terms that are constant per softmax row drop out).
        qm = lax.dot_general(
            mt_ref[...], xq_b, (((1,), (0,)), ((), ())),
            preferred_element_type=jnp.float32) + wkbq_ref[...]
        qm_ref[...] = qm.astype(jnp.bfloat16)
        m_ref[...] = jnp.full_like(m_ref, -jnp.inf)
        l_ref[...] = jnp.zeros_like(l_ref)
        acc_ref[...] = jnp.zeros_like(acc_ref)

    xk_b = xk_ref[0]                                          # (C, TK) bf16

    # scores s[j, i] = energy[i, j] for this (query-tile, kv-tile) pair.
    # Softmax runs over j == axis 0; no explicit transposes are formed.
    # TODO(synk): inspect bundle for a vxpose on the lhs here; if present,
    # stage qm in (TQ, C) layout instead.
    s = lax.dot_general(xk_b, qm_ref[...], (((0,), (0,)), ((), ())),
                        preferred_element_type=jnp.float32)   # (TK, TQ)

    if need_mask:
        # Padded key columns (absolute index >= n_valid) must not contribute.
        j_abs = lax.broadcasted_iota(jnp.int32, s.shape, 0) + ki * tk
        s = jnp.where(j_abs < n_valid, s, -jnp.inf)

    m_prev = m_ref[...]                                       # (1, TQ)
    m_new = jnp.maximum(m_prev, jnp.max(s, axis=0, keepdims=True))
    alpha = jnp.exp(m_prev - m_new)                           # (1, TQ)
    p = jnp.exp(s - m_new)                                    # (TK, TQ) f32
    l_ref[...] = alpha * l_ref[...] + jnp.sum(p, axis=0, keepdims=True)

    # acc[c, i] += sum_j x[c, j] * p[j, i]   (Wv applied once at finalize)
    acc_ref[...] = alpha * acc_ref[...] + lax.dot_general(
        xk_b, p.astype(jnp.bfloat16), (((1,), (0,)), ((), ())),
        preferred_element_type=jnp.float32)
    m_ref[...] = m_new

    @pl.when(ki == pl.num_programs(2) - 1)
    def _finalize():
        inv_l = pl.reciprocal(l_ref[...], approx=True)        # (1, TQ)
        norm = (acc_ref[...] * inv_l).astype(jnp.bfloat16)    # (C, TQ)
        # out[c, i] = sum_c' Wv[c', c] * norm[c', i] + bv[c]
        # (bv is exact here because softmax rows sum to 1.)
        out = lax.dot_general(wv_ref[...], norm, (((0,), (0,)), ((), ())),
                              preferred_element_type=jnp.float32) + bv_ref[...]
        gamma = gamma_ref[0]                                  # SMEM scalar
        o_ref[0] = (gamma * out + xq_ref[0]).astype(o_ref.dtype)


def _vmem_capacity_bytes():
    try:
        info = pltpu.get_tpu_info()
        cap = getattr(info, "vmem_capacity_bytes", None)
        if cap:
            return int(cap)
    except Exception:
        pass
    return 64 << 20  # conservative: v7x per-TensorCore VMEM


def _tile_vmem_bytes(c, tq, tk):
    xq = 2 * c * tq * 4            # f32 query block, double-buffered
    xk = 2 * c * tk * 2            # bf16 kv block, double-buffered
    out = 2 * c * tq * 4           # f32 output block, double-buffered
    weights = 2 * (2 * c * c * 2 + 2 * c * 4)     # mt/Wv (bf16) + biases
    scratch = c * tq * 2 + 2 * tq * 4 + c * tq * 4  # qm + m + l + acc
    transients = 3 * tk * tq * 4   # s (f32), p (f32), p (bf16) + slack
    return xq + xk + out + weights + scratch + transients


def _select_tiles(n_pad, c, budget):
    cands = [t for t in (1024, 512, 256, 128) if n_pad % t == 0]
    if not cands:
        cands = [n_pad]            # n_pad is a multiple of 128: still lane-dense
    best = None
    for tq in cands:               # bias TQ large first (KV re-reads ~ N/TQ)
        for tk in cands:
            if _tile_vmem_bytes(c, tq, tk) <= budget:
                key = (tq, tk)
                if best is None or key > best:
                    best = key
    if best is None:
        t = min(cands)
        return t, t
    return best


def self_attention_pallas(x_nchw, wq, bq, wk, bk, wv, bv, gamma):
    """x_nchw: (B, C, W, H) f32.  wq/wk: (C, C//8), wv: (C, C) stored as
    (in, out) matrices (transposed 1x1-conv weights); bq/bk/bv: biases;
    gamma: scalar."""
    B, C, W, H = x_nchw.shape
    N = W * H

    if C > 128:
        # TODO(synk): for C > 128 pass Wq/Wk separately (two thin projections)
        # instead of the (C, C) fold, which would inflate energy FLOPs by 8x.
        raise NotImplementedError("q/k folding path assumes C <= 128")

    # Native NCHW -> (B, C, N); pad N to a multiple of 128 for lane-dense
    # blocks / unmasked stores.  Padded key columns are masked in-kernel.
    n_pad = ((N + 127) // 128) * 128
    x = x_nchw.reshape(B, C, N)
    if n_pad != N:
        x = jnp.pad(x, ((0, 0), (0, 0), (0, n_pad - N)))
    x_kv = x.astype(jnp.bfloat16)     # bf16 KV stream (re-read N/TQ times)

    # Fold q/k projections (bk only adds per-softmax-row constants -> drops).
    del bk
    mt = (wk @ wq.T).astype(jnp.bfloat16)                     # (C, C) = Wk Wq^T
    wkbq = (wk @ bq).reshape(C, 1).astype(jnp.float32)        # (C, 1) = Wk bq
    wv_b = jnp.asarray(wv, jnp.bfloat16)                      # (C, C)
    bv2 = jnp.asarray(bv, jnp.float32).reshape(C, 1)
    gamma_arr = jnp.asarray(gamma, jnp.float32).reshape(1)

    vmem_cap = _vmem_capacity_bytes()
    budget = min(int(vmem_cap * 0.75), 96 << 20)   # ~48 MiB on v7x, 96 MiB on v5e/v6e
    tq, tk = _select_tiles(n_pad, C, budget)
    grid = (B, n_pad // tq, n_pad // tk)
    need_mask = n_pad != N

    kernel = functools.partial(_self_attention_kernel, N, tk, need_mask)

    out = pl.pallas_call(
        kernel,
        out_shape=jax.ShapeDtypeStruct((B, C, n_pad), x.dtype),
        grid_spec=pltpu.PrefetchScalarGridSpec(
            num_scalar_prefetch=0,
            grid=grid,
            in_specs=[
                pl.BlockSpec((1, C, tq), lambda b, qi, ki: (b, 0, qi)),  # x (query, f32)
                pl.BlockSpec((1, C, tk), lambda b, qi, ki: (b, 0, ki)),  # x (kv, bf16)
                pl.BlockSpec((C, C), lambda b, qi, ki: (0, 0)),          # Wk Wq^T (bf16)
                pl.BlockSpec((C, 1), lambda b, qi, ki: (0, 0)),          # Wk bq
                pl.BlockSpec((C, C), lambda b, qi, ki: (0, 0)),          # Wv (bf16)
                pl.BlockSpec((C, 1), lambda b, qi, ki: (0, 0)),          # bv
                pl.BlockSpec(memory_space=pltpu.MemorySpace.SMEM),       # gamma
            ],
            out_specs=pl.BlockSpec((1, C, tq), lambda b, qi, ki: (b, 0, qi)),
            scratch_shapes=[
                pltpu.VMEM((C, tq), jnp.bfloat16),   # folded query activations
                pltpu.VMEM((1, tq), jnp.float32),    # m (running max)
                pltpu.VMEM((1, tq), jnp.float32),    # l (running denominator)
                pltpu.VMEM((C, tq), jnp.float32),    # acc (running numerator, pre-Wv)
            ],
        ),
        compiler_params=pltpu.CompilerParams(
            dimension_semantics=("parallel", "parallel", "arbitrary"),
            vmem_limit_bytes=int(budget)),
    )(x, x_kv, mt, wkbq, wv_b, bv2, gamma_arr)

    if n_pad != N:
        out = out[:, :, :N]
    return out.reshape(B, C, W, H)


def self_attention_ref(x_nchw, wq, bq, wk, bk, wv, bv, gamma):
    """Pure-JAX f32 reference mirroring the PyTorch forward."""
    B, C, W, H = x_nchw.shape
    N = W * H
    x = x_nchw.reshape(B, C, N)                                  # (B, C, N)
    q = jnp.einsum("cd,bcn->bdn", wq, x) + bq[None, :, None]     # (B, d, N)
    k = jnp.einsum("cd,bcn->bdn", wk, x) + bk[None, :, None]     # (B, d, N)
    v = jnp.einsum("ce,bcn->ben", wv, x) + bv[None, :, None]     # (B, C, N)
    energy = jnp.einsum("bdi,bdj->bij", q, k)                    # (B, Nq, Nk)
    attn = jax.nn.softmax(energy, axis=-1)
    out = jnp.einsum("bcj,bij->bci", v, attn)                    # (B, C, N)
    y = gamma * out + x
    return y.reshape(B, C, W, H)


if __name__ == "__main__":
    key = jax.random.PRNGKey(0)
    B, C, W, H = 2, 32, 16, 16        # in_dim = 32 -> d = C // 8 = 4
    d = C // 8

    k0, k1, k2, k3, k4, k5, k6 = jax.random.split(key, 7)
    x = jax.random.normal(k0, (B, C, W, H), jnp.float32)

    # 1x1 conv params, stored as (in, out) matrices for channel matmuls.
    wq = jax.random.normal(k1, (C, d), jnp.float32) * 0.1
    bq = jax.random.normal(k2, (d,), jnp.float32) * 0.1
    wk = jax.random.normal(k3, (C, d), jnp.float32) * 0.1
    bk = jax.random.normal(k4, (d,), jnp.float32) * 0.1
    wv = jax.random.normal(k5, (C, C), jnp.float32) * 0.1
    bv = jax.random.normal(k6, (C,), jnp.float32) * 0.1

    # nn.Parameter(torch.zeros(1)): gamma starts at 0 -> output == input.
    y0 = jax.block_until_ready(
        self_attention_pallas(x, wq, bq, wk, bk, wv, bv,
                              jnp.zeros((), jnp.float32)))
    assert jnp.allclose(y0, x, atol=1e-5), float(jnp.max(jnp.abs(y0 - x)))

    # Full attention path with a nonzero gamma vs. the pure-JAX f32 reference.
    gamma = jnp.float32(0.5)
    y = jax.block_until_ready(
        self_attention_pallas(x, wq, bq, wk, bk, wv, bv, gamma))
    y_ref = self_attention_ref(x, wq, bq, wk, bk, wv, bv, gamma)
    err = float(jnp.max(jnp.abs(y - y_ref)))
    # bf16 MXU operands + approx reciprocal => bf16-level tolerance vs f32 ref.
    assert err < 5e-3, err

    # Non-multiple-of-128 spatial map (7x7 -> N=49): exercises the padded /
    # masked-key path with lane-dense blocks.
    Wp, Hp = 7, 7
    xp = jax.random.normal(jax.random.PRNGKey(1), (B, C, Wp, Hp), jnp.float32)
    gamma_p = jnp.float32(0.7)
    yp = jax.block_until_ready(
        self_attention_pallas(xp, wq, bq, wk, bk, wv, bv, gamma_p))
    yp_ref = self_attention_ref(xp, wq, bq, wk, bk, wv, bv, gamma_p)
    err_p = float(jnp.max(jnp.abs(yp - yp_ref)))
    assert err_p < 5e-3, err_p

    print("KERNEL_OK")
</pallas_src>

<mosaic_0001>
module attributes {stable_mosaic.version = 11 : i64} {
  func.func @_self_attention_kernel(%arg0: i32, %arg1: i32, %arg2: i32, %arg3: memref<1x32x256xf32, #tpu.memory_space<vmem>>, %arg4: memref<1x32x256xbf16, #tpu.memory_space<vmem>>, %arg5: memref<32x32xbf16, #tpu.memory_space<vmem>>, %arg6: memref<32x1xf32, #tpu.memory_space<vmem>>, %arg7: memref<32x32xbf16, #tpu.memory_space<vmem>>, %arg8: memref<32x1xf32, #tpu.memory_space<vmem>>, %arg9: memref<1xf32, #tpu.memory_space<smem>>, %arg10: memref<1x32x256xf32, #tpu.memory_space<vmem>>, %arg11: memref<32x256xbf16, #tpu.memory_space<vmem>>, %arg12: memref<1x256xf32, #tpu.memory_space<vmem>>, %arg13: memref<1x256xf32, #tpu.memory_space<vmem>>, %arg14: memref<32x256xf32, #tpu.memory_space<vmem>>) attributes {dimension_semantics = [#tpu.dimension_semantics<parallel>, #tpu.dimension_semantics<parallel>, #tpu.dimension_semantics<arbitrary>], iteration_bounds = array<i64: 2, 1, 1>, scalar_prefetch = 0 : i64, scratch_operands = 4 : i64, tpu.core_type = #tpu.core_type<tc>, window_params = [{transform_indices = @transform_0, window_bounds = array<i64: 1, 32, 256>}, {transform_indices = @transform_1, window_bounds = array<i64: 1, 32, 256>}, {pipeline_mode = #tpu.pipeline_mode<synchronous>, transform_indices = @transform_2, window_bounds = array<i64: 32, 32>}, {pipeline_mode = #tpu.pipeline_mode<synchronous>, transform_indices = @transform_3, window_bounds = array<i64: 32, 1>}, {pipeline_mode = #tpu.pipeline_mode<synchronous>, transform_indices = @transform_4, window_bounds = array<i64: 32, 32>}, {pipeline_mode = #tpu.pipeline_mode<synchronous>, transform_indices = @transform_5, window_bounds = array<i64: 32, 1>}, {transform_indices = @transform_6, window_bounds = array<i64: 1>}, {transform_indices = @transform_7, window_bounds = array<i64: 1, 32, 256>}]} {
    %c0_i32 = arith.constant 0 : i32
    %0 = arith.cmpi eq, %arg2, %c0_i32 : i32
    %1 = arith.extui %0 : i1 to i32
    %c0_i32_0 = arith.constant 0 : i32
    %2 = arith.cmpi ne, %1, %c0_i32_0 : i32
    scf.if %2 {
      %c0_22 = arith.constant 0 : index
      %c0_23 = arith.constant 0 : index
      %c0_24 = arith.constant 0 : index
      %33 = vector.load %arg3[%c0_22, %c0_23, %c0_24] : memref<1x32x256xf32, #tpu.memory_space<vmem>>, vector<1x32x256xf32>
      %34 = vector.shape_cast %33 : vector<1x32x256xf32> to vector<32x256xf32>
      %35 = arith.truncf %34 : vector<32x256xf32> to vector<32x256xbf16>
      %c0_25 = arith.constant 0 : index
      %c0_26 = arith.constant 0 : index
      %36 = vector.load %arg5[%c0_25, %c0_26] : memref<32x32xbf16, #tpu.memory_space<vmem>>, vector<32x32xbf16>
      %cst_27 = arith.constant dense<0.000000e+00> : vector<32x256xf32>
      %37 = tpu.matmul %36, %35, %cst_27 {dimension_numbers = #tpu.dot_dimension_numbers<[1], [0], [0], [1], [0, 0, 1, 1], [], []>} : vector<32x32xbf16>, vector<32x256xbf16>, vector<32x256xf32> -> vector<32x256xf32>
      %c0_28 = arith.constant 0 : index
      %c0_29 = arith.constant 0 : index
      %38 = vector.load %arg6[%c0_28, %c0_29] : memref<32x1xf32, #tpu.memory_space<vmem>>, vector<32x1xf32>
      %39 = vector.broadcast %38 : vector<32x1xf32> to vector<32x256xf32>
      %40 = arith.addf %37, %39 : vector<32x256xf32>
      %41 = arith.truncf %40 : vector<32x256xf32> to vector<32x256xbf16>
      %c0_30 = arith.constant 0 : index
      %c0_31 = arith.constant 0 : index
      %42 = vector.load %arg11[%c0_30, %c0_31] : memref<32x256xbf16, #tpu.memory_space<vmem>>, vector<32x256xbf16>
      tpu.vector_store %arg11[%c0_30, %c0_31], %41 {strides = array<i32>} : memref<32x256xbf16, #tpu.memory_space<vmem>>, vector<32x256xbf16>,
      %cst_32 = arith.constant 0xFF800000 : f32
      %43 = vector.broadcast %cst_32 : f32 to vector<1x256xf32>
      %c0_33 = arith.constant 0 : index
      %c0_34 = arith.constant 0 : index
      %44 = vector.load %arg12[%c0_33, %c0_34] : memref<1x256xf32, #tpu.memory_space<vmem>>, vector<1x256xf32>
      tpu.vector_store %arg12[%c0_33, %c0_34], %43 {strides = array<i32>} : memref<1x256xf32, #tpu.memory_space<vmem>>, vector<1x256xf32>,
      %cst_35 = arith.constant 0.000000e+00 : f32
      %45 = vector.broadcast %cst_35 : f32 to vector<1x256xf32>
      %c0_36 = arith.constant 0 : index
      %c0_37 = arith.constant 0 : index
      %46 = vector.load %arg13[%c0_36, %c0_37] : memref<1x256xf32, #tpu.memory_space<vmem>>, vector<1x256xf32>
      tpu.vector_store %arg13[%c0_36, %c0_37], %45 {strides = array<i32>} : memref<1x256xf32, #tpu.memory_space<vmem>>, vector<1x256xf32>,
      %cst_38 = arith.constant 0.000000e+00 : f32
      %47 = vector.broadcast %cst_38 : f32 to vector<32x256xf32>
      %c0_39 = arith.constant 0 : index
      %c0_40 = arith.constant 0 : index
      %48 = vector.load %arg14[%c0_39, %c0_40] : memref<32x256xf32, #tpu.memory_space<vmem>>, vector<32x256xf32>
      tpu.vector_store %arg14[%c0_39, %c0_40], %47 {strides = array<i32>} : memref<32x256xf32, #tpu.memory_space<vmem>>, vector<32x256xf32>,
    } else {
    }
    %c0 = arith.constant 0 : index
    %c0_1 = arith.constant 0 : index
    %c0_2 = arith.constant 0 : index
    %3 = vector.load %arg4[%c0, %c0_1, %c0_2] : memref<1x32x256xbf16, #tpu.memory_space<vmem>>, vector<1x32x256xbf16>
    %4 = vector.shape_cast %3 : vector<1x32x256xbf16> to vector<32x256xbf16>
    %c0_3 = arith.constant 0 : index
    %c0_4 = arith.constant 0 : index
    %5 = vector.load %arg11[%c0_3, %c0_4] : memref<32x256xbf16, #tpu.memory_space<vmem>>, vector<32x256xbf16>
    %cst = arith.constant dense<0.000000e+00> : vector<256x256xf32>
    %6 = tpu.matmul %4, %5, %cst {dimension_numbers = #tpu.dot_dimension_numbers<[0], [0], [1], [1], [0, 1, 1, 1], [], []>} : vector<32x256xbf16>, vector<32x256xbf16>, vector<256x256xf32> -> vector<256x256xf32>
    %c0_5 = arith.constant 0 : index
    %c0_6 = arith.constant 0 : index
    %7 = vector.load %arg12[%c0_5, %c0_6] : memref<1x256xf32, #tpu.memory_space<vmem>>, vector<1x256xf32>
    %cst_7 = arith.constant dense<0xFF800000> : vector<256xf32>
    %8 = vector.multi_reduction <maximumf>, %6, %cst_7 [0] : vector<256x256xf32> to vector<256xf32>
    %9 = vector.shape_cast %8 : vector<256xf32> to vector<1x256xf32>
    %10 = arith.maximumf %7, %9 : vector<1x256xf32>
    %11 = arith.subf %7, %10 : vector<1x256xf32>
    %12 = math.exp %11 : vector<1x256xf32>
    %13 = vector.broadcast %10 : vector<1x256xf32> to vector<256x256xf32>
    %14 = arith.subf %6, %13 : vector<256x256xf32>
    %15 = math.exp %14 : vector<256x256xf32>
    %c0_8 = arith.constant 0 : index
    %c0_9 = arith.constant 0 : index
    %16 = vector.load %arg13[%c0_8, %c0_9] : memref<1x256xf32, #tpu.memory_space<vmem>>, vector<1x256xf32>
    %17 = arith.mulf %12, %16 : vector<1x256xf32>
    %cst_10 = arith.constant dense<0.000000e+00> : vector<256xf32>
    %18 = vector.multi_reduction <add>, %15, %cst_10 [0] : vector<256x256xf32> to vector<256xf32>
    %19 = vector.shape_cast %18 : vector<256xf32> to vector<1x256xf32>
    %20 = arith.addf %17, %19 : vector<1x256xf32>
    %c0_11 = arith.constant 0 : index
    %c0_12 = arith.constant 0 : index
    %21 = vector.load %arg13[%c0_11, %c0_12] : memref<1x256xf32, #tpu.memory_space<vmem>>, vector<1x256xf32>
    tpu.vector_store %arg13[%c0_11, %c0_12], %20 {strides = array<i32>} : memref<1x256xf32, #tpu.memory_space<vmem>>, vector<1x256xf32>,
    %c0_13 = arith.constant 0 : index
    %c0_14 = arith.constant 0 : index
    %22 = vector.load %arg14[%c0_13, %c0_14] : memref<32x256xf32, #tpu.memory_space<vmem>>, vector<32x256xf32>
    %23 = vector.broadcast %12 : vector<1x256xf32> to vector<32x256xf32>
    %24 = arith.mulf %23, %22 : vector<32x256xf32>
    %25 = arith.truncf %15 : vector<256x256xf32> to vector<256x256xbf16>
    %cst_15 = arith.constant dense<0.000000e+00> : vector<32x256xf32>
    %26 = tpu.matmul %4, %25, %cst_15 {dimension_numbers = #tpu.dot_dimension_numbers<[1], [0], [0], [1], [0, 0, 1, 1], [], []>} : vector<32x256xbf16>, vector<256x256xbf16>, vector<32x256xf32> -> vector<32x256xf32>
    %27 = arith.addf %24, %26 : vector<32x256xf32>
    %c0_16 = arith.constant 0 : index
    %c0_17 = arith.constant 0 : index
    %28 = vector.load %arg14[%c0_16, %c0_17] : memref<32x256xf32, #tpu.memory_space<vmem>>, vector<32x256xf32>
    tpu.vector_store %arg14[%c0_16, %c0_17], %27 {strides = array<i32>} : memref<32x256xf32, #tpu.memory_space<vmem>>, vector<32x256xf32>,
    %c0_18 = arith.constant 0 : index
    %c0_19 = arith.constant 0 : index
    %29 = vector.load %arg12[%c0_18, %c0_19] : memref<1x256xf32, #tpu.memory_space<vmem>>, vector<1x256xf32>
    tpu.vector_store %arg12[%c0_18, %c0_19], %10 {strides = array<i32>} : memref<1x256xf32, #tpu.memory_space<vmem>>, vector<1x256xf32>,
    %c0_i32_20 = arith.constant 0 : i32
    %30 = arith.cmpi eq, %arg2, %c0_i32_20 : i32
    %31 = arith.extui %30 : i1 to i32
    %c0_i32_21 = arith.constant 0 : i32
    %32 = arith.cmpi ne, %31, %c0_i32_21 : i32
    scf.if %32 {
      %c0_22 = arith.constant 0 : index
      %c0_23 = arith.constant 0 : index
      %33 = vector.load %arg13[%c0_22, %c0_23] : memref<1x256xf32, #tpu.memory_space<vmem>>, vector<1x256xf32>
      %34 = tpu.reciprocal %33 {approx = true} : vector<1x256xf32> -> vector<1x256xf32>
      %c0_24 = arith.constant 0 : index
      %c0_25 = arith.constant 0 : index
      %35 = vector.load %arg14[%c0_24, %c0_25] : memref<32x256xf32, #tpu.memory_space<vmem>>, vector<32x256xf32>
      %36 = vector.broadcast %34 : vector<1x256xf32> to vector<32x256xf32>
      %37 = arith.mulf %35, %36 : vector<32x256xf32>
      %38 = arith.truncf %37 : vector<32x256xf32> to vector<32x256xbf16>
      %c0_26 = arith.constant 0 : index
      %c0_27 = arith.constant 0 : index
      %39 = vector.load %arg7[%c0_26, %c0_27] : memref<32x32xbf16, #tpu.memory_space<vmem>>, vector<32x32xbf16>
      %cst_28 = arith.constant dense<0.000000e+00> : vector<32x256xf32>
      %40 = tpu.matmul %39, %38, %cst_28 {dimension_numbers = #tpu.dot_dimension_numbers<[0], [0], [1], [1], [0, 1, 1, 1], [], []>} : vector<32x32xbf16>, vector<32x256xbf16>, vector<32x256xf32> -> vector<32x256xf32>
      %c0_29 = arith.constant 0 : index
      %c0_30 = arith.constant 0 : index
      %41 = vector.load %arg8[%c0_29, %c0_30] : memref<32x1xf32, #tpu.memory_space<vmem>>, vector<32x1xf32>
      %42 = vector.broadcast %41 : vector<32x1xf32> to vector<32x256xf32>
      %43 = arith.addf %40, %42 : vector<32x256xf32>
      %c0_31 = arith.constant 0 : index
      %44 = memref.load %arg9[%c0_31] : memref<1xf32, #tpu.memory_space<smem>>
      %45 = vector.broadcast %44 : f32 to vector<32x256xf32>
      %46 = arith.mulf %45, %43 : vector<32x256xf32>
      %c0_32 = arith.constant 0 : index
      %c0_33 = arith.constant 0 : index
      %c0_34 = arith.constant 0 : index
      %47 = vector.load %arg3[%c0_32, %c0_33, %c0_34] : memref<1x32x256xf32, #tpu.memory_space<vmem>>, vector<1x32x256xf32>
      %48 = vector.shape_cast %47 : vector<1x32x256xf32> to vector<32x256xf32>
      %49 = arith.addf %46, %48 : vector<32x256xf32>
      %c0_35 = arith.constant 0 : index
      %c0_36 = arith.constant 0 : index
      %c0_37 = arith.constant 0 : index
      %50 = vector.load %arg10[%c0_35, %c0_36, %c0_37] : memref<1x32x256xf32, #tpu.memory_space<vmem>>, vector<1x32x256xf32>
      %51 = vector.shape_cast %50 : vector<1x32x256xf32> to vector<32x256xf32>
      %52 = vector.shape_cast %49 : vector<32x256xf32> to vector<1x32x256xf32>
      tpu.vector_store %arg10[%c0_35, %c0_36, %c0_37], %52 {strides = array<i32>} : memref<1x32x256xf32, #tpu.memory_space<vmem>>, vector<1x32x256xf32>,
    } else {
    }
    return
  }
  func.func @transform_0(%arg0: i32, %arg1: i32, %arg2: i32) -> (i32, i32, i32) {
    %c0_i32 = arith.constant 0 : i32
    %c0_i32_0 = arith.constant 0 : i32
    return %arg0, %c0_i32, %arg1 : i32, i32, i32
  }
  func.func @transform_1(%arg0: i32, %arg1: i32, %arg2: i32) -> (i32, i32, i32) {
    %c0_i32 = arith.constant 0 : i32
    %c0_i32_0 = arith.constant 0 : i32
    return %arg0, %c0_i32, %arg2 : i32, i32, i32
  }
  func.func @transform_2(%arg0: i32, %arg1: i32, %arg2: i32) -> (i32, i32) {
    %c0_i32 = arith.constant 0 : i32
    %c0_i32_0 = arith.constant 0 : i32
    %c0_i32_1 = arith.constant 0 : i32
    return %c0_i32, %c0_i32_0 : i32, i32
  }
  func.func @transform_3(%arg0: i32, %arg1: i32, %arg2: i32) -> (i32, i32) {
    %c0_i32 = arith.constant 0 : i32
    %c0_i32_0 = arith.constant 0 : i32
    %c0_i32_1 = arith.constant 0 : i32
    return %c0_i32, %c0_i32_0 : i32, i32
  }
  func.func @transform_4(%arg0: i32, %arg1: i32, %arg2: i32) -> (i32, i32) {
    %c0_i32 = arith.constant 0 : i32
    %c0_i32_0 = arith.constant 0 : i32
    %c0_i32_1 = arith.constant 0 : i32
    return %c0_i32, %c0_i32_0 : i32, i32
  }
  func.func @transform_5(%arg0: i32, %arg1: i32, %arg2: i32) -> (i32, i32) {
    %c0_i32 = arith.constant 0 : i32
    %c0_i32_0 = arith.constant 0 : i32
    %c0_i32_1 = arith.constant 0 : i32
    return %c0_i32, %c0_i32_0 : i32, i32
  }
  func.func @transform_6(%arg0: i32, %arg1: i32, %arg2: i32) -> i32 {
    %c0_i32 = arith.constant 0 : i32
    %c0_i32_0 = arith.constant 0 : i32
    return %c0_i32 : i32
  }
  func.func @transform_7(%arg0: i32, %arg1: i32, %arg2: i32) -> (i32, i32, i32) {
    %c0_i32 = arith.constant 0 : i32
    %c0_i32_0 = arith.constant 0 : i32
    return %arg0, %c0_i32, %arg1 : i32, i32, i32
  }
}

</mosaic_0001>

<llo_original>
// kernel: tpu_custom_call.1
$region0: #{tpu_custom_call.1}
  #allocation0 [shape = 'u32[]', space=smem, size = 0x4, offset = 0x4, fixed_abs, tag = 'smem constant byte address 0x4 - core index']
  #allocation1 [shape = 'u32[144,128]{1,0:T(1,128)}', space=vmem, size = 0x12000, scoped, tag = 'internal scratch']
  #allocation2 [shape = 'bf16[32,256]{1,0:T(16,128)(2,1)}', space=vmem, size = 0x4000, scoped, tag = 'scratch operand']
  #allocation3 [shape = 'f32[1,256]{1,0:T(1,128)}', space=vmem, size = 0x400, scoped, tag = 'scratch operand']
  #allocation4 [shape = 'f32[1,256]{1,0:T(1,128)}', space=vmem, size = 0x400, scoped, tag = 'scratch operand']
  #allocation5 [shape = 'f32[32,256]{1,0:T(8,128)}', space=vmem, size = 0x8000, scoped, tag = 'scratch operand']
  #allocation6 [shape = 'f32[1]{0:T(128)S(6)}', space=smem, size = 0x200, scoped, tag = 'scoped memory for tpu_custom_call.1']
  %s0 = inlined_call_operand.hbm [shape: f32[2,32,256], index: 0, kind: input, shape index: {}]
  %s1 = inlined_call_operand.vmem [shape: bf16[2,32,256], index: 1, kind: input, shape index: {}]
  %s2 = inlined_call_operand.hbm [shape: bf16[32,32], index: 2, kind: input, shape index: {}]
  %s3 = inlined_call_operand.vmem [shape: f32[32,1], index: 3, kind: input, shape index: {}]
  %s4 = inlined_call_operand.vmem [shape: bf16[32,32], index: 4, kind: input, shape index: {}]
  %s5 = inlined_call_operand.vmem [shape: f32[32,1], index: 5, kind: input, shape index: {}]
  %s6 = inlined_call_operand.<no memory space> [shape: f32[1], index: 6, kind: input, shape index: {}]
  %s7 = inlined_call_operand.hbm [shape: f32[2,32,256], index: 7, kind: output, shape index: {}]
  %s8 = sld [smem:[#allocation0]]
  $region77: #{tpu_custom_call.1} parent=0
    _
  %s10 = ssub.s32 1, %s8
  %s11 = scalar_select 0, %s10, %s8
  %12 = sst [smem:[#allocation6]] %s6
  $region1: #{tpu_custom_call.1} parent=0
    #allocation7 [shape = 'u8[65536]{0}', space=vmem, size = 0x10000, scoped, tag = 'input window, operand 0']
    #allocation8 [shape = 's32[2]{0}', space=sflag, size = 0x8, scoped, tag = 'scoped memory for tpu_custom_call.1']
    #allocation9 [shape = 's32[2]{0}', space=sflag, size = 0x8, scoped, tag = 'scoped memory for tpu_custom_call.1']
    #allocation10 [shape = 'u8[8192]{0}', space=vmem, size = 0x2000, scoped, tag = 'input window, operand 2, single buffered']
    #allocation11 [shape = 's32[1]{0}', space=sflag, size = 0x4, scoped, tag = 'scoped memory for tpu_custom_call.1']
    #allocation12 [shape = 'u8[65536]{0}', space=vmem, size = 0x10000, scoped, tag = 'output window, operand 0']
    %13 = vsyncpa [#allocation8], 0
    %s14 = scalar_lea.sflag [#allocation8], 1
    %15 = vsyncpa %s14, 0
    %16 = vsyncpa [#allocation11], 0
    %17 = vsyncpa [#allocation9], 0
    %s18 = scalar_lea.sflag [#allocation9], 1
    %19 = vsyncpa %s18, 0
    loop: start=0, step=1, limit=4
    $region2: #{tpu_custom_call.1} parent=1 // loop_pre_header
      _
    $region3: #{tpu_custom_call.1} parent=1 // loop_header
      %s21 = sphi 0, %s25
      %p22 = scmp.ge.s32.totalorder %s21, 4
      %s28 = sphi 0, %s47
      %s29 = sphi 0, %s43
      %s30 = sphi 0, %s39
      %s31 = sphi 0, %s28
      %s32 = sphi 0, %s29
      %s33 = sphi 0, %s30
      %s34 = sphi 0, %s31
      %s35 = sphi 0, %s32
      %s36 = sphi 0, %s33
      %s52 = sphi 0, %s54
      %s55 = sphi 0, %s52
      %s56 = sphi 0, %s55
      %s72 = sphi 0, %s56
      %s80 = sphi 0, %s82
      %s83 = sphi 0, %s80
      %s84 = sphi 0, %s83
      %s100 = sphi 0, %s84
      %s104 = sphi 0, %s104
      %s106 = sphi 0, %s104
      %s107 = sphi 0, %s106
      %s121 = sphi 0, %s107
      %s125 = sphi 0, %s125
      %s127 = sphi 0, %s125
      %s128 = sphi 0, %s127
      %s142 = sphi 0, %s128
      %s146 = sphi 0, %s146
      %s148 = sphi 0, %s146
      %s149 = sphi 0, %s148
      %s163 = sphi 0, %s149
      %s167 = sphi 0, %s167
      %s169 = sphi 0, %s167
      %s170 = sphi 0, %s169
      %s184 = sphi 0, %s170
      %s188 = sphi 0, %s188
      %s190 = sphi 0, %s188
      %s191 = sphi 0, %s190
      %s205 = sphi 0, %s191
      %s213 = sphi 0, %s215
      %s216 = sphi 0, %s213
      %s217 = sphi 0, %s216
      %s233 = sphi 0, %s217
    $region4: #{tpu_custom_call.1} parent=1 // loop_header_branch
      %24 = sbr.rel (%p22) target = $region8
    $region5: #{tpu_custom_call.1} parent=1 // loop_body
      %s26 = ssub.s32 %s21, 1
      %s27 = ssub.s32 %s21, 2
      %s37 = sadd.s32 1, %s30
      %p38 = scmp.ge.s32.totalorder %s37, 1
      %s39 = scalar_select %p38, 0, %s37
      %s40 = sadd.s32 1, %s29
      %s41 = scalar_select %p38, %s40, %s29
      %p42 = scmp.ge.s32.totalorder %s41, 1
      %s43 = scalar_select %p42, 0, %s41
      %s44 = sadd.s32 1, %s28
      %s45 = scalar_select %p42, %s44, %s28
      %p46 = scmp.ge.s32.totalorder %s45, 2
      %s47 = scalar_select %p46, 0, %s45
      %s48 = ssub.s32 %s28, %s47
      %s49 = ssub.s32 %s29, %s43
      %s50 = sor.u32 %s48, %s49
      %p51 = scmp.eq.s32.totalorder %s50, 0
      %s53 = sadd.s32 %s52, 1
      %s54 = scalar_select %p51, %s52, %s53
      %p57 = pneg %p51
      %p58 = scmp.eq.s32.totalorder %s21, 1
      %p59 = por %p57, %p58
      %p60 = scmp.ne.s32.totalorder %s52, %s55
      %p61 = scmp.eq.s32.totalorder %s21, 0
      %p62 = por %p60, %p61
      %p63 = scmp.ne.s32.totalorder %s52, %s55
      %p64 = scmp.eq.s32.totalorder %s26, 1
      %p65 = por %p63, %p64
      %p66 = scmp.ne.s32.totalorder %s55, %s56
      %p67 = scmp.eq.s32.totalorder %s26, 0
      %p68 = por %p66, %p67
      %p69 = scmp.ne.s32.totalorder %s55, %s56
      %p70 = scmp.eq.s32.totalorder %s27, 1
      %p71 = por %p69, %p70
      %p73 = scmp.ne.s32.totalorder %s56, %s72
      %p74 = scmp.eq.s32.totalorder %s27, 0
      %p75 = por %p73, %p74
      %s76 = ssub.s32 %s28, %s47
      %s77 = ssub.s32 %s30, %s39
      %s78 = sor.u32 %s76, %s77
      %p79 = scmp.eq.s32.totalorder %s78, 0
      %s81 = sadd.s32 %s80, 1
      %s82 = scalar_select %p79, %s80, %s81
      %p85 = pneg %p79
      %p86 = scmp.eq.s32.totalorder %s21, 1
      %p87 = por %p85, %p86
      %p88 = scmp.ne.s32.totalorder %s80, %s83
      %p89 = scmp.eq.s32.totalorder %s21, 0
      %p90 = por %p88, %p89
      %p91 = scmp.ne.s32.totalorder %s80, %s83
      %p92 = scmp.eq.s32.totalorder %s26, 1
      %p93 = por %p91, %p92
      %p94 = scmp.ne.s32.totalorder %s83, %s84
      %p95 = scmp.eq.s32.totalorder %s26, 0
      %p96 = por %p94, %p95
      %p97 = scmp.ne.s32.totalorder %s83, %s84
      %p98 = scmp.eq.s32.totalorder %s27, 1
      %p99 = por %p97, %p98
      %p101 = scmp.ne.s32.totalorder %s84, %s100
      %p102 = scmp.eq.s32.totalorder %s27, 0
      %p103 = por %p101, %p102
      %s105 = sadd.s32 %s104, 1
      %p108 = scmp.eq.s32.totalorder %s21, 1
      %p109 = scmp.ne.s32.totalorder %s104, %s106
      %p110 = scmp.eq.s32.totalorder %s21, 0
      %p111 = por %p109, %p110
      %p112 = scmp.ne.s32.totalorder %s104, %s106
      %p113 = scmp.eq.s32.totalorder %s26, 1
      %p114 = por %p112, %p113
      %p115 = scmp.ne.s32.totalorder %s106, %s107
      %p116 = scmp.eq.s32.totalorder %s26, 0
      %p117 = por %p115, %p116
      %p118 = scmp.ne.s32.totalorder %s106, %s107
      %p119 = scmp.eq.s32.totalorder %s27, 1
      %p120 = por %p118, %p119
      %p122 = scmp.ne.s32.totalorder %s107, %s121
      %p123 = scmp.eq.s32.totalorder %s27, 0
      %p124 = por %p122, %p123
      %s126 = sadd.s32 %s125, 1
      %p129 = scmp.eq.s32.totalorder %s21, 1
      %p130 = scmp.ne.s32.totalorder %s125, %s127
      %p131 = scmp.eq.s32.totalorder %s21, 0
      %p132 = por %p130, %p131
      %p133 = scmp.ne.s32.totalorder %s125, %s127
      %p134 = scmp.eq.s32.totalorder %s26, 1
      %p135 = por %p133, %p134
      %p136 = scmp.ne.s32.totalorder %s127, %s128
      %p137 = scmp.eq.s32.totalorder %s26, 0
      %p138 = por %p136, %p137
      %p139 = scmp.ne.s32.totalorder %s127, %s128
      %p140 = scmp.eq.s32.totalorder %s27, 1
      %p141 = por %p139, %p140
      %p143 = scmp.ne.s32.totalorder %s128, %s142
      %p144 = scmp.eq.s32.totalorder %s27, 0
      %p145 = por %p143, %p144
      %s147 = sadd.s32 %s146, 1
      %p150 = scmp.eq.s32.totalorder %s21, 1
      %p151 = scmp.ne.s32.totalorder %s146, %s148
      %p152 = scmp.eq.s32.totalorder %s21, 0
      %p153 = por %p151, %p152
      %p154 = scmp.ne.s32.totalorder %s146, %s148
      %p155 = scmp.eq.s32.totalorder %s26, 1
      %p156 = por %p154, %p155
      %p157 = scmp.ne.s32.totalorder %s148, %s149
      %p158 = scmp.eq.s32.totalorder %s26, 0
      %p159 = por %p157, %p158
      %p160 = scmp.ne.s32.totalorder %s148, %s149
      %p161 = scmp.eq.s32.totalorder %s27, 1
      %p162 = por %p160, %p161
      %p164 = scmp.ne.s32.totalorder %s149, %s163
      %p165 = scmp.eq.s32.totalorder %s27, 0
      %p166 = por %p164, %p165
      %s168 = sadd.s32 %s167, 1
      %p171 = scmp.eq.s32.totalorder %s21, 1
      %p172 = scmp.ne.s32.totalorder %s167, %s169
      %p173 = scmp.eq.s32.totalorder %s21, 0
      %p174 = por %p172, %p173
      %p175 = scmp.ne.s32.totalorder %s167, %s169
      %p176 = scmp.eq.s32.totalorder %s26, 1
      %p177 = por %p175, %p176
      %p178 = scmp.ne.s32.totalorder %s169, %s170
      %p179 = scmp.eq.s32.totalorder %s26, 0
      %p180 = por %p178, %p179
      %p181 = scmp.ne.s32.totalorder %s169, %s170
      %p182 = scmp.eq.s32.totalorder %s27, 1
      %p183 = por %p181, %p182
      %p185 = scmp.ne.s32.totalorder %s170, %s184
      %p186 = scmp.eq.s32.totalorder %s27, 0
      %p187 = por %p185, %p186
      %s189 = sadd.s32 %s188, 1
      %p192 = scmp.eq.s32.totalorder %s21, 1
      %p193 = scmp.ne.s32.totalorder %s188, %s190
      %p194 = scmp.eq.s32.totalorder %s21, 0
      %p195 = por %p193, %p194
      %p196 = scmp.ne.s32.totalorder %s188, %s190
      %p197 = scmp.eq.s32.totalorder %s26, 1
      %p198 = por %p196, %p197
      %p199 = scmp.ne.s32.totalorder %s190, %s191
      %p200 = scmp.eq.s32.totalorder %s26, 0
      %p201 = por %p199, %p200
      %p202 = scmp.ne.s32.totalorder %s190, %s191
      %p203 = scmp.eq.s32.totalorder %s27, 1
      %p204 = por %p202, %p203
      %p206 = scmp.ne.s32.totalorder %s191, %s205
      %p207 = scmp.eq.s32.totalorder %s27, 0
      %p208 = por %p206, %p207
      %s209 = ssub.s32 %s28, %s47
      %s210 = ssub.s32 %s29, %s43
      %s211 = sor.u32 %s209, %s210
      %p212 = scmp.eq.s32.totalorder %s211, 0
      %s214 = sadd.s32 %s213, 1
      %s215 = scalar_select %p212, %s213, %s214
      %p218 = pneg %p212
      %p219 = scmp.eq.s32.totalorder %s21, 1
      %p220 = por %p218, %p219
      %p221 = scmp.ne.s32.totalorder %s213, %s216
      %p222 = scmp.eq.s32.totalorder %s21, 0
      %p223 = por %p221, %p222
      %p224 = scmp.ne.s32.totalorder %s213, %s216
      %p225 = scmp.eq.s32.totalorder %s26, 1
      %p226 = por %p224, %p225
      %p227 = scmp.ne.s32.totalorder %s216, %s217
      %p228 = scmp.eq.s32.totalorder %s26, 0
      %p229 = por %p227, %p228
      %p230 = scmp.ne.s32.totalorder %s216, %s217
      %p231 = scmp.eq.s32.totalorder %s27, 1
      %p232 = por %p230, %p231
      %p234 = scmp.ne.s32.totalorder %s217, %s233
      %p235 = scmp.eq.s32.totalorder %s27, 0
      %p236 = por %p234, %p235
      %p237 = scmp.le.s32.totalorder 1, %s21
      %p238 = scmp.lt.s32.totalorder %s21, 3
      %p239 = pnand %p237, %p238
      %p240 = pneg %p239
      // Predicated region
      $region9: #{tpu_custom_call.1} parent=5 // pred_check
        _
      $region10: #{tpu_custom_call.1} parent=5 // pred_check_branch
        %242 = sbr.rel (%p239) target = $region12
      $region11: #{tpu_custom_call.1} parent=5 // pred_region
        %s243 = ssub.s32 %s21, 1
        // Predicated region
        $region13: #{tpu_custom_call.1} parent=11 // pred_check
          %p244 = pneg %p117
        $region14: #{tpu_custom_call.1} parent=11 // pred_check_branch
          %246 = sbr.rel (%p244) target = $region16
        $region15: #{tpu_custom_call.1} parent=11 // pred_region
          %s248 = ssub.s32 256, 256
          %249 = vsyncadd [#allocation11], %s248
          %s250 = sshll.u32 [#allocation10], 4
          %s251 = int_to_ptr.vmem [resolvable:$true] %s250
          %256 = dma.hbm_to_vmem [thread:$0]  %s2, 256, %s251, [#allocation11], 64, 64, 4
        $region16: #{tpu_custom_call.1} parent=11 // pred_fallthru
          _
        // Predicated region
        $region17: #{tpu_custom_call.1} parent=11 // pred_check
          %p257 = pneg %p138
        $region18: #{tpu_custom_call.1} parent=11 // pred_check_branch
          %259 = sbr.rel (%p257) target = $region20
        $region19: #{tpu_custom_call.1} parent=11 // pred_region
          _
        $region20: #{tpu_custom_call.1} parent=11 // pred_fallthru
          _
        // Predicated region
        $region21: #{tpu_custom_call.1} parent=11 // pred_check
          %p260 = pneg %p159
        $region22: #{tpu_custom_call.1} parent=11 // pred_check_branch
          %262 = sbr.rel (%p260) target = $region24
        $region23: #{tpu_custom_call.1} parent=11 // pred_region
          _
        $region24: #{tpu_custom_call.1} parent=11 // pred_fallthru
          _
        // Predicated region
        $region25: #{tpu_custom_call.1} parent=11 // pred_check
          %p263 = pneg %p180
        $region26: #{tpu_custom_call.1} parent=11 // pred_check_branch
          %265 = sbr.rel (%p263) target = $region28
        $region27: #{tpu_custom_call.1} parent=11 // pred_region
          _
        $region28: #{tpu_custom_call.1} parent=11 // pred_fallthru
          _
        // Predicated region
        $region29: #{tpu_custom_call.1} parent=11 // pred_check
          %p266 = pneg %p201
        $region30: #{tpu_custom_call.1} parent=11 // pred_check_branch
          %268 = sbr.rel (%p266) target = $region32
        $region31: #{tpu_custom_call.1} parent=11 // pred_region
          _
        $region32: #{tpu_custom_call.1} parent=11 // pred_fallthru
          _
      $region12: #{tpu_custom_call.1} parent=5 // pred_fallthru
        _
      %p269 = scmp.lt.s32.totalorder %s21, 2
      // Predicated region
      $region33: #{tpu_custom_call.1} parent=5 // pred_check
        %p270 = pneg %p269
      $region34: #{tpu_custom_call.1} parent=5 // pred_check_branch
        %272 = sbr.rel (%p270) target = $region36
      $region35: #{tpu_custom_call.1} parent=5 // pred_region
        // Predicated region
        $region37: #{tpu_custom_call.1} parent=35 // pred_check
          %p273 = pneg %p62
        $region38: #{tpu_custom_call.1} parent=35 // pred_check_branch
          %275 = sbr.rel (%p273) target = $region40
        $region39: #{tpu_custom_call.1} parent=35 // pred_region
          %s276 = sand.u32 %s52, 1
          %s277 = scalar_lea.sflag [#allocation8], %s276
          %s278 = sand.u32 %s52, 1
          %s279 = smul.addr %s278, 64
          %s280 = scalar_lea.vmem [#allocation7], %s279
          %s281 = smul.u32 2, %s29
          %s283 = ssub.s32 1024, 1024
          %284 = vsyncadd %s277, %s283
          %s285 = smul.addr %s28, 8
          %s286 = sadd.s32 %s281, %s285
          %s287 = smul.addr %s286, 128
          %s288 = scalar_lea.hbm %s0, %s287
          %s289 = sshll.u32 %s280, 4
          %s290 = int_to_ptr.vmem [resolvable:$true] %s289
          %295 = dma.hbm_to_vmem [thread:$0]  %s288, 1024, %s290, %s277, 256, 256, 16
        $region40: #{tpu_custom_call.1} parent=35 // pred_fallthru
          _
        // Predicated region
        $region41: #{tpu_custom_call.1} parent=35 // pred_check
          %p296 = pneg %p90
        $region42: #{tpu_custom_call.1} parent=35 // pred_check_branch
          %298 = sbr.rel (%p296) target = $region44
        $region43: #{tpu_custom_call.1} parent=35 // pred_region
          %s299 = smul.u32 2, %s30
          %p300 = scmp.lt.s32.totalorder %s28, 1
          %s301 = scalar_select %p300, %s28, 1
          %p302 = scmp.lt.s32.totalorder %s299, 1
          %s303 = scalar_select %p302, %s299, 1
          %s304 = smul.addr %s301, 8
          %s305 = sadd.s32 %s303, %s304
          %s306 = smul.addr %s305, 4
          %s307 = scalar_lea.vmem %s1, %s306
          %s308 = smul.u32 2, %s30
        $region44: #{tpu_custom_call.1} parent=35 // pred_fallthru
          _
      $region36: #{tpu_custom_call.1} parent=5 // pred_fallthru
        _
      %p309 = scmp.le.s32.totalorder 1, %s21
      %p310 = scmp.lt.s32.totalorder %s21, 3
      %p311 = pnand %p309, %p310
      %p312 = pneg %p311
      // Predicated region
      $region45: #{tpu_custom_call.1} parent=5 // pred_check
        _
      $region46: #{tpu_custom_call.1} parent=5 // pred_check_branch
        %314 = sbr.rel (%p311) target = $region48
      $region47: #{tpu_custom_call.1} parent=5 // pred_region
        %s315 = ssub.s32 %s21, 1
        %s316 = sand.u32 %s55, 1
        %s317 = scalar_lea.sflag [#allocation8], %s316
        %s318 = sand.u32 %s55, 1
        %s319 = smul.addr %s318, 64
        %s320 = scalar_lea.vmem [#allocation7], %s319
        // Predicated region
        $region49: #{tpu_custom_call.1} parent=47 // pred_check
          %p321 = pneg %p68
        $region50: #{tpu_custom_call.1} parent=47 // pred_check_branch
          %323 = sbr.rel (%p321) target = $region52
        $region51: #{tpu_custom_call.1} parent=47 // pred_region
          %324 = dma.done %s317, 1024
        $region52: #{tpu_custom_call.1} parent=47 // pred_fallthru
          _
        // Predicated region
        $region53: #{tpu_custom_call.1} parent=47 // pred_check
          %p325 = pneg %p117
        $region54: #{tpu_custom_call.1} parent=47 // pred_check_branch
          %327 = sbr.rel (%p325) target = $region56
        $region55: #{tpu_custom_call.1} parent=47 // pred_region
          %328 = dma.done [#allocation11], 256
        $region56: #{tpu_custom_call.1} parent=47 // pred_fallthru
          _
        %s329 = sand.u32 %s55, 1
        %s330 = scalar_lea.sflag [#allocation8], %s329
        %s331 = sand.u32 %s55, 1
        %s332 = smul.addr %s331, 64
        %s333 = scalar_lea.vmem [#allocation7], %s332
        %p334 = pneg %p68
        %p335 = pneg %p65
        %s336 = smul.u32 2, %s33
        %p337 = scmp.lt.s32.totalorder %s31, 1
        %s338 = scalar_select %p337, %s31, 1
        %p339 = scmp.lt.s32.totalorder %s336, 1
        %s340 = scalar_select %p339, %s336, 1
        %s341 = smul.addr %s338, 8
        %s342 = sadd.s32 %s340, %s341
        %s343 = smul.addr %s342, 4
        %s344 = scalar_lea.vmem %s1, %s343
        %p345 = pneg %p96
        %p346 = pneg %p93
        %p347 = pneg %p117
        %p348 = pneg %p114
        %p349 = pneg %p138
        %p350 = pneg %p135
        %p351 = pneg %p159
        %p352 = pneg %p156
        %p353 = pneg %p180
        %p354 = pneg %p177
        %p355 = pneg %p201
        %p356 = pneg %p198
        %p357 = pneg %p229
        %p358 = pneg %p226
        %s359 = sand.u32 %s216, 1
        %s360 = scalar_lea.sflag [#allocation9], %s359
        %s361 = sand.u32 %s216, 1
        %s362 = smul.addr %s361, 64
        %s363 = scalar_lea.vmem [#allocation12], %s362
        %s364 = smul.u32 2, %s32
        %s365 = smul.u32 2, %s33
        %p366 = scmp.lt.s32.totalorder %s31, 1
        %s367 = scalar_select %p366, %s31, 1
        %p368 = scmp.lt.s32.totalorder %s365, 1
        %s369 = scalar_select %p368, %s365, 1
        %s370 = smul.addr %s367, 8
        %s371 = sadd.s32 %s369, %s370
        %s372 = smul.addr %s371, 4
        %s373 = scalar_lea.vmem %s1, %s372
        %s374 = smul.u32 2, %s33
        %s375 = smul.u32 2, %s32
        %p377 = scmp.eq.s32.totalorder %s33, 0
        // Predicated region
        $region57: #{tpu_custom_call.1} parent=47 // pred_check
          %p378 = pneg %p377
        $region58: #{tpu_custom_call.1} parent=47 // pred_check_branch
          %380 = sbr.rel (%p378) target = $region60
        $region59: #{tpu_custom_call.1} parent=47 // pred_region
          %v381 = vld [vmem:[%s320] sm:$0xff]
          %v382 = vld [vmem:[%s320 + $0x8] sm:$0xff]
          %v383 = vld [vmem:[%s320 + $0x10] sm:$0xff]
          %v384 = vld [vmem:[%s320 + $0x18] sm:$0xff]
          %v385 = vld [vmem:[%s320 + $0x20] sm:$0xff]
          %v386 = vld [vmem:[%s320 + $0x28] sm:$0xff]
          %v387 = vld [vmem:[%s320 + $0x30] sm:$0xff]
          %v388 = vld [vmem:[%s320 + $0x38] sm:$0xff]
          %v389 = vpack.c.bf16 %v383, %v381
          %v390 = vpack.c.bf16 %v384, %v382
          %v391 = vpack.c.bf16 %v387, %v385
          %v392 = vpack.c.bf16 %v388, %v386
          %v393 = vld [vmem:[#allocation10] sm:$0xf]
          %v394 = vld [vmem:[#allocation10 + $0x4] sm:$0xf]
          %v395 = vld [vmem:[#allocation10 + $0x8] sm:$0xf]
          %v396 = vld [vmem:[#allocation10 + $0xc] sm:$0xf]
          %v397 = vld [vmem:[%s3] sm:$0xff]
          %v398 = vld [vmem:[%s3 + $0x8] sm:$0xff]
          %v399 = vld [vmem:[%s3 + $0x10] sm:$0xff]
          %v400 = vld [vmem:[%s3 + $0x18] sm:$0xff]
          %402 = vset.pattern.permute.xlu0 0
          %403 = vperm.xlu0 %402, %v397
          %v404 = vpop.permute.xlu0 %403
          %407 = vset.pattern.permute.xlu0 0
          %408 = vperm.xlu0 %407, %v398
          %v409 = vpop.permute.xlu0 %408
          %412 = vset.pattern.permute.xlu0 0
          %413 = vperm.xlu0 %412, %v399
          %v414 = vpop.permute.xlu0 %413
          %417 = vset.pattern.permute.xlu0 0
          %418 = vperm.xlu0 %417, %v400
          %v419 = vpop.permute.xlu0 %418
          %v425 = vunpack.c.l.b16 %v393
          %v426 = vunpack.c.l.b16 %v394
          %v427 = vunpack.c.l.b16 %v395
          %v428 = vunpack.c.l.b16 %v396
          %v429 = vpack.c.b16 %v426, %v425
          %v430 = vpack.c.b16 %v428, %v427
          %vm431 = vcmask 261120
          %v433 = vsel %vm431, %v429, 0
          %v436 = vsel %vm431, %v430, 0
          %438 = vmatprep.subr.bf16.mxu0 %v390
          %439 = vmatpush1.bf16.msra.mxu0 %v389
          %440 = vmatprep.subr.bf16.mxu0 %v392
          %441 = vmatpush1.bf16.msra.mxu0 %v391
          %442 = vmatprep.subr.bf16.mxu0 0
          %443 = vmatpush1.bf16.msra.mxu0 0
          %444 = vmatprep.subr.bf16.mxu0 0
          %445 = vmatpush1.bf16.msra.mxu0 0
          %446 = vmatprep.subr.bf16.mxu0 0
          %447 = vmatpush1.bf16.msra.mxu0 0
          %448 = vmatprep.subr.bf16.mxu0 0
          %449 = vmatpush1.bf16.msra.mxu0 0
          %450 = vmatprep.subr.bf16.mxu0 0
          %451 = vmatpush1.bf16.msra.mxu0 0
          %452 = vmatprep.subr.bf16.mxu0 0
          %453 = vmatpush1.bf16.msra.mxu0 0
          %454 = vmatprep.subr.bf16.mxu0 0
          %455 = vmatpush1.bf16.msra.mxu0 0
          %456 = vmatprep.subr.bf16.mxu0 0
          %457 = vmatpush1.bf16.msra.mxu0 0
          %458 = vmatprep.subr.bf16.mxu0 0
          %459 = vmatpush1.bf16.msra.mxu0 0
          %460 = vmatprep.subr.bf16.mxu0 0
          %461 = vmatpush1.bf16.msra.mxu0 0
          %462 = vmatprep.subr.bf16.mxu0 0
          %463 = vmatpush1.bf16.msra.mxu0 0
          %464 = vmatprep.subr.bf16.mxu0 0
          %465 = vmatpush1.bf16.msra.mxu0 0
          %466 = vmatprep.subr.bf16.mxu0 0
          %467 = vmatpush1.bf16.msra.mxu0 0
          %468 = vmatprep.subr.bf16.mxu0 0
          %469 = vmatpush1.bf16.msra.mxu0 0
          %470 = vmatprep.mubr.bf16.mxu0 0
          %471 = vmatmul.mubr.bf16.gmra.mrb[0].mxu0 %v433
          %v472 = vpop.f32.mrb[0].mxu0
          %v473 = vadd.f32 %v404, %v472
          %v474 = vpop.f32.mrb[0].mxu0
          %v475 = vadd.f32 %v404, %v474
          %v476 = vpop.f32.mrb[0].mxu0
          %v477 = vadd.f32 %v409, %v476
          %v478 = vpop.f32.mrb[0].mxu0
          %v479 = vadd.f32 %v409, %v478
          %480 = vmatprep.mubr.bf16.mxu0 0
          %481 = vmatmul.mubr.bf16.gmra.mrb[0].mxu0 %v436
          %v482 = vpop.f32.mrb[0].mxu0
          %v483 = vadd.f32 %v414, %v482
          %v484 = vpop.f32.mrb[0].mxu0
          %v485 = vadd.f32 %v414, %v484
          %v486 = vpop.f32.mrb[0].mxu0
          %v487 = vadd.f32 %v419, %v486
          %v488 = vpop.f32.mrb[0].mxu0
          %v489 = vadd.f32 %v419, %v488
          %490 = vdwg.mxu0
          %v491 = vpack.c.bf16 %v477, %v473
          %v492 = vpack.c.bf16 %v479, %v475
          %v493 = vpack.c.bf16 %v487, %v483
          %v494 = vpack.c.bf16 %v489, %v485
          %495 = vst [vmem:[#allocation2] sm:$0xff] %v491
          %496 = vst [vmem:[#allocation2 + $0x8] sm:$0xff] %v492
          %497 = vst [vmem:[#allocation2 + $0x10] sm:$0xff] %v493
          %498 = vst [vmem:[#allocation2 + $0x18] sm:$0xff] %v494
          %v499 = vlaneseq
          %vm500 = vcmp.ge.s32.totalorder %v499, 0
          %vm501 = vcmp.lt.s32.totalorder %v499, 256
          %vm502 = vmand %vm500, %vm501
          %503 = vst.msk [vmem:[#allocation3] sm:$0x3] %vm502, -inf
          %504 = vst.msk [vmem:[#allocation4] sm:$0x3] %vm502, 0.0
          %505 = vst [vmem:[#allocation5] sm:$0xff] 0.0
          %506 = vst [vmem:[#allocation5 + $0x8] sm:$0xff] 0.0
          %507 = vst [vmem:[#allocation5 + $0x10] sm:$0xff] 0.0
          %508 = vst [vmem:[#allocation5 + $0x18] sm:$0xff] 0.0
          %509 = vst [vmem:[#allocation5 + $0x20] sm:$0xff] 0.0
          %510 = vst [vmem:[#allocation5 + $0x28] sm:$0xff] 0.0
          %511 = vst [vmem:[#allocation5 + $0x30] sm:$0xff] 0.0
          %512 = vst [vmem:[#allocation5 + $0x38] sm:$0xff] 0.0
        $region60: #{tpu_custom_call.1} parent=47 // pred_fallthru
          _
        %v513 = vld [vmem:[%s373] sm:$0xff]
        %v514 = vld [vmem:[%s373 + $0x8] sm:$0xff]
        %v515 = vld [vmem:[%s373 + $0x10] sm:$0xff]
        %v516 = vld [vmem:[%s373 + $0x18] sm:$0xff]
        %v517 = vld [vmem:[#allocation2] sm:$0xff]
        %v518 = vld [vmem:[#allocation2 + $0x8] sm:$0xff]
        %v519 = vld [vmem:[#allocation2 + $0x10] sm:$0xff]
        %v520 = vld [vmem:[#allocation2 + $0x18] sm:$0xff]
        %v525 = vunpack.c.l.b16 %v513
        %v526 = vunpack.c.h.b16 %v513
        %v527 = vunpack.c.l.b16 %v514
        %v528 = vunpack.c.h.b16 %v514
        %v529 = vunpack.c.l.b16 %v515
        %v530 = vunpack.c.h.b16 %v515
        %v531 = vunpack.c.l.b16 %v516
        %v532 = vunpack.c.h.b16 %v516
        %v533 = vpack.c.b16 %v527, %v525
        %v534 = vpack.c.b16 %v528, %v526
        %v535 = vpack.c.b16 %v531, %v529
        %v536 = vpack.c.b16 %v532, %v530
        %541 = vxpose.xlu0.c.b16.start [1/8] %v533, 128
        %542 = vxpose.xlu0.c.b16.cont [2/8] %v535, 128
        %543 = vxpose.xlu0.c.b16.cont [3/8] 0, 128
        %544 = vxpose.xlu0.c.b16.cont [4/8] 0, 128
        %545 = vxpose.xlu0.c.b16.cont [5/8] 0, 128
        %546 = vxpose.xlu0.c.b16.cont [6/8] 0, 128
        %547 = vxpose.xlu0.c.b16.cont [7/8] 0, 128
        %548 = vxpose.xlu0.c.b16.end [8/8] 0, 128
        %v549 = vpop.trf.xlu0
        %v550 = vpop.trf.xlu0
        %v551 = vpop.trf.xlu0
        %v552 = vpop.trf.xlu0
        %v553 = vpop.trf.xlu0
        %v554 = vpop.trf.xlu0
        %v555 = vpop.trf.xlu0
        %v556 = vpop.trf.xlu0
        %557 = vxpose.xlu0.c.b16.start [1/8] %v534, 128
        %558 = vxpose.xlu0.c.b16.cont [2/8] %v536, 128
        %559 = vxpose.xlu0.c.b16.cont [3/8] 0, 128
        %560 = vxpose.xlu0.c.b16.cont [4/8] 0, 128
        %561 = vxpose.xlu0.c.b16.cont [5/8] 0, 128
        %562 = vxpose.xlu0.c.b16.cont [6/8] 0, 128
        %563 = vxpose.xlu0.c.b16.cont [7/8] 0, 128
        %564 = vxpose.xlu0.c.b16.end [8/8] 0, 128
        %v565 = vpop.trf.xlu0
        %v566 = vpop.trf.xlu0
        %v567 = vpop.trf.xlu0
        %v568 = vpop.trf.xlu0
        %v569 = vpop.trf.xlu0
        %v570 = vpop.trf.xlu0
        %v571 = vpop.trf.xlu0
        %v572 = vpop.trf.xlu0
        %vm573 = vcmask 261120
        %v575 = vsel %vm573, %v549, 0
        %v578 = vsel %vm573, %v550, 0
        %v581 = vsel %vm573, %v551, 0
        %v584 = vsel %vm573, %v552, 0
        %v587 = vsel %vm573, %v553, 0
        %v590 = vsel %vm573, %v554, 0
        %v593 = vsel %vm573, %v555, 0
        %v596 = vsel %vm573, %v556, 0
        %v599 = vsel %vm573, %v565, 0
        %v602 = vsel %vm573, %v566, 0
        %v605 = vsel %vm573, %v567, 0
        %v608 = vsel %vm573, %v568, 0
        %v611 = vsel %vm573, %v569, 0
        %v614 = vsel %vm573, %v570, 0
        %v617 = vsel %vm573, %v571, 0
        %v620 = vsel %vm573, %v572, 0
        %622 = vmatprep.subr.bf16.mxu0 %v518
        %623 = vmatpush1.bf16.msra.mxu0 %v517
        %624 = vmatprep.subr.bf16.mxu0 %v520
        %625 = vmatpush1.bf16.msra.mxu0 %v519
        %626 = vmatprep.subr.bf16.mxu0 0
        %627 = vmatpush1.bf16.msra.mxu0 0
        %628 = vmatprep.subr.bf16.mxu0 0
        %629 = vmatpush1.bf16.msra.mxu0 0
        %630 = vmatprep.subr.bf16.mxu0 0
        %631 = vmatpush1.bf16.msra.mxu0 0
        %632 = vmatprep.subr.bf16.mxu0 0
        %633 = vmatpush1.bf16.msra.mxu0 0
        %634 = vmatprep.subr.bf16.mxu0 0
        %635 = vmatpush1.bf16.msra.mxu0 0
        %636 = vmatprep.subr.bf16.mxu0 0
        %637 = vmatpush1.bf16.msra.mxu0 0
        %638 = vmatprep.subr.bf16.mxu0 0
        %639 = vmatpush1.bf16.msra.mxu0 0
        %640 = vmatprep.subr.bf16.mxu0 0
        %641 = vmatpush1.bf16.msra.mxu0 0
        %642 = vmatprep.subr.bf16.mxu0 0
        %643 = vmatpush1.bf16.msra.mxu0 0
        %644 = vmatprep.subr.bf16.mxu0 0
        %645 = vmatpush1.bf16.msra.mxu0 0
        %646 = vmatprep.subr.bf16.mxu0 0
        %647 = vmatpush1.bf16.msra.mxu0 0
        %648 = vmatprep.subr.bf16.mxu0 0
        %649 = vmatpush1.bf16.msra.mxu0 0
        %650 = vmatprep.subr.bf16.mxu0 0
        %651 = vmatpush1.bf16.msra.mxu0 0
        %652 = vmatprep.subr.bf16.mxu0 0
        %653 = vmatpush1.bf16.msra.mxu0 0
        %654 = vmatprep.mubr.bf16.mxu0 0
        %655 = vmatmul.mubr.bf16.gmra.mrb[0].mxu0 %v575
        %v656 = vpop.f32.mrb[0].mxu0
        %v657 = vadd.f32 0.0, %v656
        %v658 = vpop.f32.mrb[0].mxu0
        %v659 = vadd.f32 0.0, %v658
        %v660 = vpop.f32.mrb[0].mxu0
        %v661 = vadd.f32 0.0, %v660
        %v662 = vpop.f32.mrb[0].mxu0
        %v663 = vadd.f32 0.0, %v662
        %664 = vmatprep.mubr.bf16.mxu0 0
        %665 = vmatmul.mubr.bf16.gmra.mrb[0].mxu0 %v578
        %v666 = vpop.f32.mrb[0].mxu0
        %v667 = vadd.f32 0.0, %v666
        %v668 = vpop.f32.mrb[0].mxu0
        %v669 = vadd.f32 0.0, %v668
        %v670 = vpop.f32.mrb[0].mxu0
        %v671 = vadd.f32 0.0, %v670
        %v672 = vpop.f32.mrb[0].mxu0
        %v673 = vadd.f32 0.0, %v672
        %674 = vmatprep.mubr.bf16.mxu0 0
        %675 = vmatmul.mubr.bf16.gmra.mrb[0].mxu0 %v581
        %v676 = vpop.f32.mrb[0].mxu0
        %v677 = vadd.f32 0.0, %v676
        %v678 = vpop.f32.mrb[0].mxu0
        %v679 = vadd.f32 0.0, %v678
        %v680 = vpop.f32.mrb[0].mxu0
        %v681 = vadd.f32 0.0, %v680
        %v682 = vpop.f32.mrb[0].mxu0
        %v683 = vadd.f32 0.0, %v682
        %684 = vmatprep.mubr.bf16.mxu0 0
        %685 = vmatmul.mubr.bf16.gmra.mrb[0].mxu0 %v584
        %v686 = vpop.f32.mrb[0].mxu0
        %v687 = vadd.f32 0.0, %v686
        %v688 = vpop.f32.mrb[0].mxu0
        %v689 = vadd.f32 0.0, %v688
        %v690 = vpop.f32.mrb[0].mxu0
        %v691 = vadd.f32 0.0, %v690
        %v692 = vpop.f32.mrb[0].mxu0
        %v693 = vadd.f32 0.0, %v692
        %694 = vmatprep.mubr.bf16.mxu0 0
        %695 = vmatmul.mubr.bf16.gmra.mrb[0].mxu0 %v587
        %v696 = vpop.f32.mrb[0].mxu0
        %v697 = vadd.f32 0.0, %v696
        %v698 = vpop.f32.mrb[0].mxu0
        %v699 = vadd.f32 0.0, %v698
        %v700 = vpop.f32.mrb[0].mxu0
        %v701 = vadd.f32 0.0, %v700
        %v702 = vpop.f32.mrb[0].mxu0
        %v703 = vadd.f32 0.0, %v702
        %704 = vmatprep.mubr.bf16.mxu0 0
        %705 = vmatmul.mubr.bf16.gmra.mrb[0].mxu0 %v590
        %v706 = vpop.f32.mrb[0].mxu0
        %v707 = vadd.f32 0.0, %v706
        %v708 = vpop.f32.mrb[0].mxu0
        %v709 = vadd.f32 0.0, %v708
        %v710 = vpop.f32.mrb[0].mxu0
        %v711 = vadd.f32 0.0, %v710
        %v712 = vpop.f32.mrb[0].mxu0
        %v713 = vadd.f32 0.0, %v712
        %714 = vmatprep.mubr.bf16.mxu0 0
        %715 = vmatmul.mubr.bf16.gmra.mrb[0].mxu0 %v593
        %v716 = vpop.f32.mrb[0].mxu0
        %v717 = vadd.f32 0.0, %v716
        %v718 = vpop.f32.mrb[0].mxu0
        %v719 = vadd.f32 0.0, %v718
        %v720 = vpop.f32.mrb[0].mxu0
        %v721 = vadd.f32 0.0, %v720
        %v722 = vpop.f32.mrb[0].mxu0
        %v723 = vadd.f32 0.0, %v722
        %724 = vmatprep.mubr.bf16.mxu0 0
        %725 = vmatmul.mubr.bf16.gmra.mrb[0].mxu0 %v596
        %v726 = vpop.f32.mrb[0].mxu0
        %v727 = vadd.f32 0.0, %v726
        %v728 = vpop.f32.mrb[0].mxu0
        %v729 = vadd.f32 0.0, %v728
        %v730 = vpop.f32.mrb[0].mxu0
        %v731 = vadd.f32 0.0, %v730
        %v732 = vpop.f32.mrb[0].mxu0
        %v733 = vadd.f32 0.0, %v732
        %734 = vmatprep.mubr.bf16.mxu0 0
        %735 = vmatmul.mubr.bf16.gmra.mrb[0].mxu0 %v599
        %v736 = vpop.f32.mrb[0].mxu0
        %v737 = vadd.f32 0.0, %v736
        %v738 = vpop.f32.mrb[0].mxu0
        %v739 = vadd.f32 0.0, %v738
        %v740 = vpop.f32.mrb[0].mxu0
        %v741 = vadd.f32 0.0, %v740
        %v742 = vpop.f32.mrb[0].mxu0
        %v743 = vadd.f32 0.0, %v742
        %744 = vmatprep.mubr.bf16.mxu0 0
        %745 = vmatmul.mubr.bf16.gmra.mrb[0].mxu0 %v602
        %v746 = vpop.f32.mrb[0].mxu0
        %v747 = vadd.f32 0.0, %v746
        %v748 = vpop.f32.mrb[0].mxu0
        %v749 = vadd.f32 0.0, %v748
        %v750 = vpop.f32.mrb[0].mxu0
        %v751 = vadd.f32 0.0, %v750
        %v752 = vpop.f32.mrb[0].mxu0
        %v753 = vadd.f32 0.0, %v752
        %754 = vmatprep.mubr.bf16.mxu0 0
        %755 = vmatmul.mubr.bf16.gmra.mrb[0].mxu0 %v605
        %v756 = vpop.f32.mrb[0].mxu0
        %v757 = vadd.f32 0.0, %v756
        %v758 = vpop.f32.mrb[0].mxu0
        %v759 = vadd.f32 0.0, %v758
        %v760 = vpop.f32.mrb[0].mxu0
        %v761 = vadd.f32 0.0, %v760
        %v762 = vpop.f32.mrb[0].mxu0
        %v763 = vadd.f32 0.0, %v762
        %764 = vmatprep.mubr.bf16.mxu0 0
        %765 = vmatmul.mubr.bf16.gmra.mrb[0].mxu0 %v608
        %v766 = vpop.f32.mrb[0].mxu0
        %v767 = vadd.f32 0.0, %v766
        %v768 = vpop.f32.mrb[0].mxu0
        %v769 = vadd.f32 0.0, %v768
        %v770 = vpop.f32.mrb[0].mxu0
        %v771 = vadd.f32 0.0, %v770
        %v772 = vpop.f32.mrb[0].mxu0
        %v773 = vadd.f32 0.0, %v772
        %774 = vmatprep.mubr.bf16.mxu0 0
        %775 = vmatmul.mubr.bf16.gmra.mrb[0].mxu0 %v611
        %v776 = vpop.f32.mrb[0].mxu0
        %v777 = vadd.f32 0.0, %v776
        %v778 = vpop.f32.mrb[0].mxu0
        %v779 = vadd.f32 0.0, %v778
        %v780 = vpop.f32.mrb[0].mxu0
        %v781 = vadd.f32 0.0, %v780
        %v782 = vpop.f32.mrb[0].mxu0
        %v783 = vadd.f32 0.0, %v782
        %784 = vmatprep.mubr.bf16.mxu0 0
        %785 = vmatmul.mubr.bf16.gmra.mrb[0].mxu0 %v614
        %v786 = vpop.f32.mrb[0].mxu0
        %v787 = vadd.f32 0.0, %v786
        %v788 = vpop.f32.mrb[0].mxu0
        %v789 = vadd.f32 0.0, %v788
        %v790 = vpop.f32.mrb[0].mxu0
        %v791 = vadd.f32 0.0, %v790
        %v792 = vpop.f32.mrb[0].mxu0
        %v793 = vadd.f32 0.0, %v792
        %794 = vmatprep.mubr.bf16.mxu0 0
        %795 = vmatmul.mubr.bf16.gmra.mrb[0].mxu0 %v617
        %v796 = vpop.f32.mrb[0].mxu0
        %v797 = vadd.f32 0.0, %v796
        %v798 = vpop.f32.mrb[0].mxu0
        %v799 = vadd.f32 0.0, %v798
        %v800 = vpop.f32.mrb[0].mxu0
        %v801 = vadd.f32 0.0, %v800
        %v802 = vpop.f32.mrb[0].mxu0
        %v803 = vadd.f32 0.0, %v802
        %804 = vmatprep.mubr.bf16.mxu0 0
        %805 = vmatmul.mubr.bf16.gmra.mrb[0].mxu0 %v620
        %v806 = vpop.f32.mrb[0].mxu0
        %v807 = vadd.f32 0.0, %v806
        %v808 = vpop.f32.mrb[0].mxu0
        %v809 = vadd.f32 0.0, %v808
        %v810 = vpop.f32.mrb[0].mxu0
        %v811 = vadd.f32 0.0, %v810
        %v812 = vpop.f32.mrb[0].mxu0
        %v813 = vadd.f32 0.0, %v812
        %814 = vdwg.mxu0
        %v815 = vld [vmem:[#allocation3] sm:$0x3]
        %v816 = vmax.f32 %v657, %v667
        %v817 = vmax.f32 %v661, %v671
        %v818 = vmax.f32 %v816, %v677
        %v819 = vmax.f32 %v817, %v681
        %v820 = vmax.f32 %v818, %v687
        %v821 = vmax.f32 %v819, %v691
        %v822 = vmax.f32 %v820, %v697
        %v823 = vmax.f32 %v821, %v701
        %v824 = vmax.f32 %v822, %v707
        %v825 = vmax.f32 %v823, %v711
        %v826 = vmax.f32 %v824, %v717
        %v827 = vmax.f32 %v825, %v721
        %v828 = vmax.f32 %v826, %v727
        %v829 = vmax.f32 %v827, %v731
        %v830 = vmax.f32 %v828, %v737
        %v831 = vmax.f32 %v829, %v741
        %v832 = vmax.f32 %v830, %v747
        %v833 = vmax.f32 %v831, %v751
        %v834 = vmax.f32 %v832, %v757
        %v835 = vmax.f32 %v833, %v761
        %v836 = vmax.f32 %v834, %v767
        %v837 = vmax.f32 %v835, %v771
        %v838 = vmax.f32 %v836, %v777
        %v839 = vmax.f32 %v837, %v781
        %v840 = vmax.f32 %v838, %v787
        %v841 = vmax.f32 %v839, %v791
        %v842 = vmax.f32 %v840, %v797
        %v843 = vmax.f32 %v841, %v801
        %v844 = vmax.f32 %v842, %v807
        %v845 = vmax.f32 %v843, %v811
        %v846 = vmax.f32 %v844, %v845
        %v847 = vrot.slane %v846, 4
        %v848 = vmax.f32 %v846, %v847
        %v849 = vrot.slane %v848, 2
        %v850 = vmax.f32 %v848, %v849
        %v851 = vrot.slane %v850, 1
        %v852 = vmax.f32 %v850, %v851
        %v853 = vmax.f32 %v659, %v669
        %v854 = vmax.f32 %v663, %v673
        %v855 = vmax.f32 %v853, %v679
        %v856 = vmax.f32 %v854, %v683
        %v857 = vmax.f32 %v855, %v689
        %v858 = vmax.f32 %v856, %v693
        %v859 = vmax.f32 %v857, %v699
        %v860 = vmax.f32 %v858, %v703
        %v861 = vmax.f32 %v859, %v709
        %v862 = vmax.f32 %v860, %v713
        %v863 = vmax.f32 %v861, %v719
        %v864 = vmax.f32 %v862, %v723
        %v865 = vmax.f32 %v863, %v729
        %v866 = vmax.f32 %v864, %v733
        %v867 = vmax.f32 %v865, %v739
        %v868 = vmax.f32 %v866, %v743
        %v869 = vmax.f32 %v867, %v749
        %v870 = vmax.f32 %v868, %v753
        %v871 = vmax.f32 %v869, %v759
        %v872 = vmax.f32 %v870, %v763
        %v873 = vmax.f32 %v871, %v769
        %v874 = vmax.f32 %v872, %v773
        %v875 = vmax.f32 %v873, %v779
        %v876 = vmax.f32 %v874, %v783
        %v877 = vmax.f32 %v875, %v789
        %v878 = vmax.f32 %v876, %v793
        %v879 = vmax.f32 %v877, %v799
        %v880 = vmax.f32 %v878, %v803
        %v881 = vmax.f32 %v879, %v809
        %v882 = vmax.f32 %v880, %v813
        %v883 = vmax.f32 %v881, %v882
        %v884 = vrot.slane %v883, 4
        %v885 = vmax.f32 %v883, %v884
        %v886 = vrot.slane %v885, 2
        %v887 = vmax.f32 %v885, %v886
        %v888 = vrot.slane %v887, 1
        %v889 = vmax.f32 %v887, %v888
        %v892 = vcombine.low %v852, %v889
        %v894 = vunpack.c.l.s4 1966171168
        %v895 = vunpack.c.0.s8 %v894
        %v896 = vlaneseq
        %v897 = vshrl.u32 %v896, 7
        %v898 = vsub.s32 %v895, %v897
        %v899 = vrot.slane %v892, %v898
        %v901 = vunpack.c.l.s4 1966171168
        %v902 = vunpack.c.0.s8 %v901
        %v903 = vlaneseq
        %v904 = vshrl.u32 %v903, 7
        %v905 = vsub.s32 %v902, %v904
        %v906 = vrot.slane %v899, %v905
        %v908 = vmax.f32 %v815, %v906
        %v909 = vsub.f32 %v815, %v908
        %v910 = vmul.f32 %v909, 1.442695
        %v911 = vpow.pop %v910
        %v913 = vlaneseq
        %v914 = vshrl.u32 %v913, 7
        %v915 = vsub.s32 0, %v914
        %v916 = vrot.slane %v908, %v915
        %v917 = vlaneseq
        %v918 = vshrl.u32 %v917, 7
        %v919 = vsub.s32 1, %v918
        %v920 = vrot.slane %v908, %v919
        %v923 = vsub.f32 %v657, %v916
        %v924 = vsub.f32 %v659, %v920
        %v925 = vsub.f32 %v661, %v916
        %v926 = vsub.f32 %v663, %v920
        %v927 = vsub.f32 %v667, %v916
        %v928 = vsub.f32 %v669, %v920
        %v929 = vsub.f32 %v671, %v916
        %v930 = vsub.f32 %v673, %v920
        %v931 = vsub.f32 %v677, %v916
        %v932 = vsub.f32 %v679, %v920
        %v933 = vsub.f32 %v681, %v916
        %v934 = vsub.f32 %v683, %v920
        %v935 = vsub.f32 %v687, %v916
        %v936 = vsub.f32 %v689, %v920
        %v937 = vsub.f32 %v691, %v916
        %v938 = vsub.f32 %v693, %v920
        %v939 = vsub.f32 %v697, %v916
        %v940 = vsub.f32 %v699, %v920
        %v941 = vsub.f32 %v701, %v916
        %v942 = vsub.f32 %v703, %v920
        %v943 = vsub.f32 %v707, %v916
        %v944 = vsub.f32 %v709, %v920
        %v945 = vsub.f32 %v711, %v916
        %v946 = vsub.f32 %v713, %v920
        %v947 = vsub.f32 %v717, %v916
        %v948 = vsub.f32 %v719, %v920
        %v949 = vsub.f32 %v721, %v916
        %v950 = vsub.f32 %v723, %v920
        %v951 = vsub.f32 %v727, %v916
        %v952 = vsub.f32 %v729, %v920
        %v953 = vsub.f32 %v731, %v916
        %v954 = vsub.f32 %v733, %v920
        %v955 = vsub.f32 %v737, %v916
        %v956 = vsub.f32 %v739, %v920
        %v957 = vsub.f32 %v741, %v916
        %v958 = vsub.f32 %v743, %v920
        %v959 = vsub.f32 %v747, %v916
        %v960 = vsub.f32 %v749, %v920
        %v961 = vsub.f32 %v751, %v916
        %v962 = vsub.f32 %v753, %v920
        %v963 = vsub.f32 %v757, %v916
        %v964 = vsub.f32 %v759, %v920
        %v965 = vsub.f32 %v761, %v916
        %v966 = vsub.f32 %v763, %v920
        %v967 = vsub.f32 %v767, %v916
        %v968 = vsub.f32 %v769, %v920
        %v969 = vsub.f32 %v771, %v916
        %v970 = vsub.f32 %v773, %v920
        %v971 = vsub.f32 %v777, %v916
        %v972 = vsub.f32 %v779, %v920
        %v973 = vsub.f32 %v781, %v916
        %v974 = vsub.f32 %v783, %v920
        %v975 = vsub.f32 %v787, %v916
        %v976 = vsub.f32 %v789, %v920
        %v977 = vsub.f32 %v791, %v916
        %v978 = vsub.f32 %v793, %v920
        %v979 = vsub.f32 %v797, %v916
        %v980 = vsub.f32 %v799, %v920
        %v981 = vsub.f32 %v801, %v916
        %v982 = vsub.f32 %v803, %v920
        %v983 = vsub.f32 %v807, %v916
        %v984 = vsub.f32 %v809, %v920
        %v985 = vsub.f32 %v811, %v916
        %v986 = vsub.f32 %v813, %v920
        %v987 = vmul.f32 %v923, 1.442695
        %v988 = vpow.pop %v987
        %v989 = vmul.f32 %v924, 1.442695
        %v990 = vpow.pop %v989
        %v991 = vmul.f32 %v925, 1.442695
        %v992 = vpow.pop %v991
        %v993 = vmul.f32 %v926, 1.442695
        %v994 = vpow.pop %v993
        %v995 = vmul.f32 %v927, 1.442695
        %v996 = vpow.pop %v995
        %v997 = vmul.f32 %v928, 1.442695
        %v998 = vpow.pop %v997
        %v999 = vmul.f32 %v929, 1.442695
        %v1000 = vpow.pop %v999
        %v1001 = vmul.f32 %v930, 1.442695
        %v1002 = vpow.pop %v1001
        %v1003 = vmul.f32 %v931, 1.442695
        %v1004 = vpow.pop %v1003
        %v1005 = vmul.f32 %v932, 1.442695
        %v1006 = vpow.pop %v1005
        %v1007 = vmul.f32 %v933, 1.442695
        %v1008 = vpow.pop %v1007
        %v1009 = vmul.f32 %v934, 1.442695
        %v1010 = vpow.pop %v1009
        %v1011 = vmul.f32 %v935, 1.442695
        %v1012 = vpow.pop %v1011
        %v1013 = vmul.f32 %v936, 1.442695
        %v1014 = vpow.pop %v1013
        %v1015 = vmul.f32 %v937, 1.442695
        %v1016 = vpow.pop %v1015
        %v1017 = vmul.f32 %v938, 1.442695
        %v1018 = vpow.pop %v1017
        %v1019 = vmul.f32 %v939, 1.442695
        %v1020 = vpow.pop %v1019
        %v1021 = vmul.f32 %v940, 1.442695
        %v1022 = vpow.pop %v1021
        %v1023 = vmul.f32 %v941, 1.442695
        %v1024 = vpow.pop %v1023
        %v1025 = vmul.f32 %v942, 1.442695
        %v1026 = vpow.pop %v1025
        %v1027 = vmul.f32 %v943, 1.442695
        %v1028 = vpow.pop %v1027
        %v1029 = vmul.f32 %v944, 1.442695
        %v1030 = vpow.pop %v1029
        %v1031 = vmul.f32 %v945, 1.442695
        %v1032 = vpow.pop %v1031
        %v1033 = vmul.f32 %v946, 1.442695
        %v1034 = vpow.pop %v1033
        %v1035 = vmul.f32 %v947, 1.442695
        %v1036 = vpow.pop %v1035
        %v1037 = vmul.f32 %v948, 1.442695
        %v1038 = vpow.pop %v1037
        %v1039 = vmul.f32 %v949, 1.442695
        %v1040 = vpow.pop %v1039
        %v1041 = vmul.f32 %v950, 1.442695
        %v1042 = vpow.pop %v1041
        %v1043 = vmul.f32 %v951, 1.442695
        %v1044 = vpow.pop %v1043
        %v1045 = vmul.f32 %v952, 1.442695
        %v1046 = vpow.pop %v1045
        %v1047 = vmul.f32 %v953, 1.442695
        %v1048 = vpow.pop %v1047
        %v1049 = vmul.f32 %v954, 1.442695
        %v1050 = vpow.pop %v1049
        %v1051 = vmul.f32 %v955, 1.442695
        %v1052 = vpow.pop %v1051
        %v1053 = vmul.f32 %v956, 1.442695
        %v1054 = vpow.pop %v1053
        %v1055 = vmul.f32 %v957, 1.442695
        %v1056 = vpow.pop %v1055
        %v1057 = vmul.f32 %v958, 1.442695
        %v1058 = vpow.pop %v1057
        %v1059 = vmul.f32 %v959, 1.442695
        %v1060 = vpow.pop %v1059
        %v1061 = vmul.f32 %v960, 1.442695
        %v1062 = vpow.pop %v1061
        %v1063 = vmul.f32 %v961, 1.442695
        %v1064 = vpow.pop %v1063
        %v1065 = vmul.f32 %v962, 1.442695
        %v1066 = vpow.pop %v1065
        %v1067 = vmul.f32 %v963, 1.442695
        %v1068 = vpow.pop %v1067
        %v1069 = vmul.f32 %v964, 1.442695
        %v1070 = vpow.pop %v1069
        %v1071 = vmul.f32 %v965, 1.442695
        %v1072 = vpow.pop %v1071
        %v1073 = vmul.f32 %v966, 1.442695
        %v1074 = vpow.pop %v1073
        %v1075 = vmul.f32 %v967, 1.442695
        %v1076 = vpow.pop %v1075
        %v1077 = vmul.f32 %v968, 1.442695
        %v1078 = vpow.pop %v1077
        %v1079 = vmul.f32 %v969, 1.442695
        %v1080 = vpow.pop %v1079
        %v1081 = vmul.f32 %v970, 1.442695
        %v1082 = vpow.pop %v1081
        %v1083 = vmul.f32 %v971, 1.442695
        %v1084 = vpow.pop %v1083
        %v1085 = vmul.f32 %v972, 1.442695
        %v1086 = vpow.pop %v1085
        %v1087 = vmul.f32 %v973, 1.442695
        %v1088 = vpow.pop %v1087
        %v1089 = vmul.f32 %v974, 1.442695
        %v1090 = vpow.pop %v1089
        %v1091 = vmul.f32 %v975, 1.442695
        %v1092 = vpow.pop %v1091
        %v1093 = vmul.f32 %v976, 1.442695
        %v1094 = vpow.pop %v1093
        %v1095 = vmul.f32 %v977, 1.442695
        %v1096 = vpow.pop %v1095
        %v1097 = vmul.f32 %v978, 1.442695
        %v1098 = vpow.pop %v1097
        %v1099 = vmul.f32 %v979, 1.442695
        %v1100 = vpow.pop %v1099
        %v1101 = vmul.f32 %v980, 1.442695
        %v1102 = vpow.pop %v1101
        %v1103 = vmul.f32 %v981, 1.442695
        %v1104 = vpow.pop %v1103
        %v1105 = vmul.f32 %v982, 1.442695
        %v1106 = vpow.pop %v1105
        %v1107 = vmul.f32 %v983, 1.442695
        %v1108 = vpow.pop %v1107
        %v1109 = vmul.f32 %v984, 1.442695
        %v1110 = vpow.pop %v1109
        %v1111 = vmul.f32 %v985, 1.442695
        %v1112 = vpow.pop %v1111
        %v1113 = vmul.f32 %v986, 1.442695
        %v1114 = vpow.pop %v1113
        %v1115 = vld [vmem:[#allocation4] sm:$0x3]
        %v1116 = vmul.f32 %v911, %v1115
        %v1117 = vadd.f32 %v988, %v992
        %v1118 = vadd.f32 %v1117, %v996
        %v1119 = vadd.f32 %v1118, %v1000
        %v1120 = vadd.f32 %v1119, %v1004
        %v1121 = vadd.f32 %v1120, %v1008
        %v1122 = vadd.f32 %v1121, %v1012
        %v1123 = vadd.f32 %v1122, %v1016
        %v1124 = vadd.f32 %v1123, %v1020
        %v1125 = vadd.f32 %v1124, %v1024
        %v1126 = vadd.f32 %v1125, %v1028
        %v1127 = vadd.f32 %v1126, %v1032
        %v1128 = vadd.f32 %v1127, %v1036
        %v1129 = vadd.f32 %v1128, %v1040
        %v1130 = vadd.f32 %v1129, %v1044
        %v1131 = vadd.f32 %v1130, %v1048
        %v1132 = vadd.f32 %v1131, %v1052
        %v1133 = vadd.f32 %v1132, %v1056
        %v1134 = vadd.f32 %v1133, %v1060
        %v1135 = vadd.f32 %v1134, %v1064
        %v1136 = vadd.f32 %v1135, %v1068
        %v1137 = vadd.f32 %v1136, %v1072
        %v1138 = vadd.f32 %v1137, %v1076
        %v1139 = vadd.f32 %v1138, %v1080
        %v1140 = vadd.f32 %v1139, %v1084
        %v1141 = vadd.f32 %v1140, %v1088
        %v1142 = vadd.f32 %v1141, %v1092
        %v1143 = vadd.f32 %v1142, %v1096
        %v1144 = vadd.f32 %v1143, %v1100
        %v1145 = vadd.f32 %v1144, %v1104
        %v1146 = vadd.f32 %v1145, %v1108
        %v1147 = vadd.f32 %v1146, %v1112
        %v1148 = vrot.slane %v1147, 4
        %v1149 = vadd.f32 %v1147, %v1148
        %v1150 = vrot.slane %v1149, 2
        %v1151 = vadd.f32 %v1149, %v1150
        %v1152 = vrot.slane %v1151, 1
        %v1153 = vadd.f32 %v1151, %v1152
        %v1154 = vadd.f32 %v990, %v994
        %v1155 = vadd.f32 %v1154, %v998
        %v1156 = vadd.f32 %v1155, %v1002
        %v1157 = vadd.f32 %v1156, %v1006
        %v1158 = vadd.f32 %v1157, %v1010
        %v1159 = vadd.f32 %v1158, %v1014
        %v1160 = vadd.f32 %v1159, %v1018
        %v1161 = vadd.f32 %v1160, %v1022
        %v1162 = vadd.f32 %v1161, %v1026
        %v1163 = vadd.f32 %v1162, %v1030
        %v1164 = vadd.f32 %v1163, %v1034
        %v1165 = vadd.f32 %v1164, %v1038
        %v1166 = vadd.f32 %v1165, %v1042
        %v1167 = vadd.f32 %v1166, %v1046
        %v1168 = vadd.f32 %v1167, %v1050
        %v1169 = vadd.f32 %v1168, %v1054
        %v1170 = vadd.f32 %v1169, %v1058
        %v1171 = vadd.f32 %v1170, %v1062
        %v1172 = vadd.f32 %v1171, %v1066
        %v1173 = vadd.f32 %v1172, %v1070
        %v1174 = vadd.f32 %v1173, %v1074
        %v1175 = vadd.f32 %v1174, %v1078
        %v1176 = vadd.f32 %v1175, %v1082
        %v1177 = vadd.f32 %v1176, %v1086
        %v1178 = vadd.f32 %v1177, %v1090
        %v1179 = vadd.f32 %v1178, %v1094
        %v1180 = vadd.f32 %v1179, %v1098
        %v1181 = vadd.f32 %v1180, %v1102
        %v1182 = vadd.f32 %v1181, %v1106
        %v1183 = vadd.f32 %v1182, %v1110
        %v1184 = vadd.f32 %v1183, %v1114
        %v1185 = vrot.slane %v1184, 4
        %v1186 = vadd.f32 %v1184, %v1185
        %v1187 = vrot.slane %v1186, 2
        %v1188 = vadd.f32 %v1186, %v1187
        %v1189 = vrot.slane %v1188, 1
        %v1190 = vadd.f32 %v1188, %v1189
        %v1193 = vcombine.low %v1153, %v1190
        %v1195 = vunpack.c.l.s4 1966171168
        %v1196 = vunpack.c.0.s8 %v1195
        %v1197 = vlaneseq
        %v1198 = vshrl.u32 %v1197, 7
        %v1199 = vsub.s32 %v1196, %v1198
        %v1200 = vrot.slane %v1193, %v1199
        %v1202 = vunpack.c.l.s4 1966171168
        %v1203 = vunpack.c.0.s8 %v1202
        %v1204 = vlaneseq
        %v1205 = vshrl.u32 %v1204, 7
        %v1206 = vsub.s32 %v1203, %v1205
        %v1207 = vrot.slane %v1200, %v1206
        %v1209 = vadd.f32 %v1116, %v1207
        %v1210 = vlaneseq
        %vm1211 = vcmp.ge.s32.totalorder %v1210, 0
        %vm1212 = vcmp.lt.s32.totalorder %v1210, 256
        %vm1213 = vmand %vm1211, %vm1212
        %1214 = vst.msk [vmem:[#allocation4] sm:$0x3] %vm1213, %v1209
        %v1215 = vld [vmem:[#allocation5] sm:$0xff]
        %v1216 = vld [vmem:[#allocation5 + $0x8] sm:$0xff]
        %v1217 = vld [vmem:[#allocation5 + $0x10] sm:$0xff]
        %v1218 = vld [vmem:[#allocation5 + $0x18] sm:$0xff]
        %v1219 = vld [vmem:[#allocation5 + $0x20] sm:$0xff]
        %v1220 = vld [vmem:[#allocation5 + $0x28] sm:$0xff]
        %v1221 = vld [vmem:[#allocation5 + $0x30] sm:$0xff]
        %v1222 = vld [vmem:[#allocation5 + $0x38] sm:$0xff]
        %v1224 = vlaneseq
        %v1225 = vshrl.u32 %v1224, 7
        %v1226 = vsub.s32 0, %v1225
        %v1227 = vrot.slane %v911, %v1226
        %v1228 = vlaneseq
        %v1229 = vshrl.u32 %v1228, 7
        %v1230 = vsub.s32 1, %v1229
        %v1231 = vrot.slane %v911, %v1230
        %v1234 = vmul.f32 %v1227, %v1215
        %v1235 = vmul.f32 %v1231, %v1216
        %v1236 = vmul.f32 %v1227, %v1217
        %v1237 = vmul.f32 %v1231, %v1218
        %v1238 = vmul.f32 %v1227, %v1219
        %v1239 = vmul.f32 %v1231, %v1220
        %v1240 = vmul.f32 %v1227, %v1221
        %v1241 = vmul.f32 %v1231, %v1222
        %v1242 = vpack.c.bf16 %v992, %v988
        %v1243 = vpack.c.bf16 %v994, %v990
        %v1244 = vpack.c.bf16 %v1000, %v996
        %v1245 = vpack.c.bf16 %v1002, %v998
        %v1246 = vpack.c.bf16 %v1008, %v1004
        %v1247 = vpack.c.bf16 %v1010, %v1006
        %v1248 = vpack.c.bf16 %v1016, %v1012
        %v1249 = vpack.c.bf16 %v1018, %v1014
        %v1250 = vpack.c.bf16 %v1024, %v1020
        %v1251 = vpack.c.bf16 %v1026, %v1022
        %v1252 = vpack.c.bf16 %v1032, %v1028
        %v1253 = vpack.c.bf16 %v1034, %v1030
        %v1254 = vpack.c.bf16 %v1040, %v1036
        %v1255 = vpack.c.bf16 %v1042, %v1038
        %v1256 = vpack.c.bf16 %v1048, %v1044
        %v1257 = vpack.c.bf16 %v1050, %v1046
        %v1258 = vpack.c.bf16 %v1056, %v1052
        %v1259 = vpack.c.bf16 %v1058, %v1054
        %v1260 = vpack.c.bf16 %v1064, %v1060
        %v1261 = vpack.c.bf16 %v1066, %v1062
        %v1262 = vpack.c.bf16 %v1072, %v1068
        %v1263 = vpack.c.bf16 %v1074, %v1070
        %v1264 = vpack.c.bf16 %v1080, %v1076
        %v1265 = vpack.c.bf16 %v1082, %v1078
        %v1266 = vpack.c.bf16 %v1088, %v1084
        %v1267 = vpack.c.bf16 %v1090, %v1086
        %v1268 = vpack.c.bf16 %v1096, %v1092
        %v1269 = vpack.c.bf16 %v1098, %v1094
        %v1270 = vpack.c.bf16 %v1104, %v1100
        %v1271 = vpack.c.bf16 %v1106, %v1102
        %v1272 = vpack.c.bf16 %v1112, %v1108
        %v1273 = vpack.c.bf16 %v1114, %v1110
        %1274 = vmatprep.subr.bf16.mxu0 %v1243
        %1275 = vmatpush1.bf16.msra.mxu0 %v1242
        %1276 = vmatprep.subr.bf16.mxu0 %v1245
        %1277 = vmatpush1.bf16.msra.mxu0 %v1244
        %1278 = vmatprep.subr.bf16.mxu0 %v1247
        %1279 = vmatpush1.bf16.msra.mxu0 %v1246
        %1280 = vmatprep.subr.bf16.mxu0 %v1249
        %1281 = vmatpush1.bf16.msra.mxu0 %v1248
        %1282 = vmatprep.subr.bf16.mxu0 %v1251
        %1283 = vmatpush1.bf16.msra.mxu0 %v1250
        %1284 = vmatprep.subr.bf16.mxu0 %v1253
        %1285 = vmatpush1.bf16.msra.mxu0 %v1252
        %1286 = vmatprep.subr.bf16.mxu0 %v1255
        %1287 = vmatpush1.bf16.msra.mxu0 %v1254
        %1288 = vmatprep.subr.bf16.mxu0 %v1257
        %1289 = vmatpush1.bf16.msra.mxu0 %v1256
        %1290 = vmatprep.subr.bf16.mxu0 %v1259
        %1291 = vmatpush1.bf16.msra.mxu0 %v1258
        %1292 = vmatprep.subr.bf16.mxu0 %v1261
        %1293 = vmatpush1.bf16.msra.mxu0 %v1260
        %1294 = vmatprep.subr.bf16.mxu0 %v1263
        %1295 = vmatpush1.bf16.msra.mxu0 %v1262
        %1296 = vmatprep.subr.bf16.mxu0 %v1265
        %1297 = vmatpush1.bf16.msra.mxu0 %v1264
        %1298 = vmatprep.subr.bf16.mxu0 %v1267
        %1299 = vmatpush1.bf16.msra.mxu0 %v1266
        %1300 = vmatprep.subr.bf16.mxu0 %v1269
        %1301 = vmatpush1.bf16.msra.mxu0 %v1268
        %1302 = vmatprep.subr.bf16.mxu0 %v1271
        %1303 = vmatpush1.bf16.msra.mxu0 %v1270
        %1304 = vmatprep.subr.bf16.mxu0 %v1273
        %1305 = vmatpush1.bf16.msra.mxu0 %v1272
        %1306 = vmatprep.mubr.bf16.mxu0 %v534
        %1307 = vmatmul.mubr.bf16.gmra.mrb[0].mxu0 %v533
        %v1308 = vpop.f32.mrb[0].mxu0
        %v1309 = vadd.f32 0.0, %v1308
        %v1310 = vpop.f32.mrb[0].mxu0
        %v1311 = vadd.f32 0.0, %v1310
        %v1312 = vpop.f32.mrb[0].mxu0
        %v1313 = vadd.f32 0.0, %v1312
        %v1314 = vpop.f32.mrb[0].mxu0
        %v1315 = vadd.f32 0.0, %v1314
        %1316 = vmatprep.mubr.bf16.mxu0 %v536
        %1317 = vmatmul.mubr.bf16.gmra.mrb[0].mxu0 %v535
        %v1318 = vpop.f32.mrb[0].mxu0
        %v1319 = vadd.f32 0.0, %v1318
        %v1320 = vpop.f32.mrb[0].mxu0
        %v1321 = vadd.f32 0.0, %v1320
        %v1322 = vpop.f32.mrb[0].mxu0
        %v1323 = vadd.f32 0.0, %v1322
        %v1324 = vpop.f32.mrb[0].mxu0
        %v1325 = vadd.f32 0.0, %v1324
        %1326 = vdwg.mxu0
        %v1327 = vadd.f32 %v1234, %v1309
        %v1328 = vadd.f32 %v1235, %v1311
        %v1329 = vadd.f32 %v1236, %v1313
        %v1330 = vadd.f32 %v1237, %v1315
        %v1331 = vadd.f32 %v1238, %v1319
        %v1332 = vadd.f32 %v1239, %v1321
        %v1333 = vadd.f32 %v1240, %v1323
        %v1334 = vadd.f32 %v1241, %v1325
        %1335 = vst [vmem:[#allocation5] sm:$0xff] %v1327
        %1336 = vst [vmem:[#allocation5 + $0x8] sm:$0xff] %v1328
        %1337 = vst [vmem:[#allocation5 + $0x10] sm:$0xff] %v1329
        %1338 = vst [vmem:[#allocation5 + $0x18] sm:$0xff] %v1330
        %1339 = vst [vmem:[#allocation5 + $0x20] sm:$0xff] %v1331
        %1340 = vst [vmem:[#allocation5 + $0x28] sm:$0xff] %v1332
        %1341 = vst [vmem:[#allocation5 + $0x30] sm:$0xff] %v1333
        %1342 = vst [vmem:[#allocation5 + $0x38] sm:$0xff] %v1334
        %1343 = vst.msk [vmem:[#allocation3] sm:$0x3] %vm1213, %v908
        // Predicated region
        $region61: #{tpu_custom_call.1} parent=47 // pred_check
          %p1344 = pneg %p377
        $region62: #{tpu_custom_call.1} parent=47 // pred_check_branch
          %1346 = sbr.rel (%p1344) target = $region64
        $region63: #{tpu_custom_call.1} parent=47 // pred_region
          %v1347 = vld [vmem:[#allocation4] sm:$0x3]
          %v1348 = vrcp.pop %v1347
          %v1349 = vld [vmem:[#allocation5] sm:$0xff]
          %v1350 = vld [vmem:[#allocation5 + $0x8] sm:$0xff]
          %v1351 = vld [vmem:[#allocation5 + $0x10] sm:$0xff]
          %v1352 = vld [vmem:[#allocation5 + $0x18] sm:$0xff]
          %v1353 = vld [vmem:[#allocation5 + $0x20] sm:$0xff]
          %v1354 = vld [vmem:[#allocation5 + $0x28] sm:$0xff]
          %v1355 = vld [vmem:[#allocation5 + $0x30] sm:$0xff]
          %v1356 = vld [vmem:[#allocation5 + $0x38] sm:$0xff]
          %v1358 = vlaneseq
          %v1359 = vshrl.u32 %v1358, 7
          %v1360 = vsub.s32 0, %v1359
          %v1361 = vrot.slane %v1348, %v1360
          %v1362 = vlaneseq
          %v1363 = vshrl.u32 %v1362, 7
          %v1364 = vsub.s32 1, %v1363
          %v1365 = vrot.slane %v1348, %v1364
          %v1368 = vmul.f32 %v1349, %v1361
          %v1369 = vmul.f32 %v1350, %v1365
          %v1370 = vmul.f32 %v1351, %v1361
          %v1371 = vmul.f32 %v1352, %v1365
          %v1372 = vmul.f32 %v1353, %v1361
          %v1373 = vmul.f32 %v1354, %v1365
          %v1374 = vmul.f32 %v1355, %v1361
          %v1375 = vmul.f32 %v1356, %v1365
          %v1376 = vpack.c.bf16 %v1370, %v1368
          %v1377 = vpack.c.bf16 %v1371, %v1369
          %v1378 = vpack.c.bf16 %v1374, %v1372
          %v1379 = vpack.c.bf16 %v1375, %v1373
          %v1380 = vld [vmem:[%s4] sm:$0xf]
          %v1381 = vld [vmem:[%s4 + $0x4] sm:$0xf]
          %v1382 = vld [vmem:[%s4 + $0x8] sm:$0xf]
          %v1383 = vld [vmem:[%s4 + $0xc] sm:$0xf]
          %v1384 = vld [vmem:[%s5] sm:$0xff]
          %v1385 = vld [vmem:[%s5 + $0x8] sm:$0xff]
          %v1386 = vld [vmem:[%s5 + $0x10] sm:$0xff]
          %v1387 = vld [vmem:[%s5 + $0x18] sm:$0xff]
          %1389 = vset.pattern.permute.xlu0 0
          %1390 = vperm.xlu0 %1389, %v1384
          %v1391 = vpop.permute.xlu0 %1390
          %1394 = vset.pattern.permute.xlu0 0
          %1395 = vperm.xlu0 %1394, %v1385
          %v1396 = vpop.permute.xlu0 %1395
          %1399 = vset.pattern.permute.xlu0 0
          %1400 = vperm.xlu0 %1399, %v1386
          %v1401 = vpop.permute.xlu0 %1400
          %1404 = vset.pattern.permute.xlu0 0
          %1405 = vperm.xlu0 %1404, %v1387
          %v1406 = vpop.permute.xlu0 %1405
          %v1412 = vunpack.c.l.b16 %v1380
          %v1413 = vunpack.c.l.b16 %v1381
          %v1414 = vunpack.c.l.b16 %v1382
          %v1415 = vunpack.c.l.b16 %v1383
          %v1416 = vpack.c.b16 %v1413, %v1412
          %v1417 = vpack.c.b16 %v1415, %v1414
          %1420 = vxpose.xlu0.c.b16.start [1/8] %v1416, 128
          %1421 = vxpose.xlu0.c.b16.cont [2/8] %v1417, 128
          %1422 = vxpose.xlu0.c.b16.cont [3/8] 0, 128
          %1423 = vxpose.xlu0.c.b16.cont [4/8] 0, 128
          %1424 = vxpose.xlu0.c.b16.cont [5/8] 0, 128
          %1425 = vxpose.xlu0.c.b16.cont [6/8] 0, 128
          %1426 = vxpose.xlu0.c.b16.cont [7/8] 0, 128
          %1427 = vxpose.xlu0.c.b16.end [8/8] 0, 128
          %v1428 = vpop.trf.xlu0
          %v1429 = vpop.trf.xlu0
          %v1430 = vpop.trf.xlu0
          %v1431 = vpop.trf.xlu0
          %v1432 = vpop.trf.xlu0
          %v1433 = vpop.trf.xlu0
          %v1434 = vpop.trf.xlu0
          %v1435 = vpop.trf.xlu0
          %v1437 = vsel %vm573, %v1428, 0
          %v1440 = vsel %vm573, %v1429, 0
          %1442 = vmatprep.subr.bf16.mxu0 %v1377
          %1443 = vmatpush1.bf16.msra.mxu0 %v1376
          %1444 = vmatprep.subr.bf16.mxu0 %v1379
          %1445 = vmatpush1.bf16.msra.mxu0 %v1378
          %1446 = vmatprep.subr.bf16.mxu0 0
          %1447 = vmatpush1.bf16.msra.mxu0 0
          %1448 = vmatprep.subr.bf16.mxu0 0
          %1449 = vmatpush1.bf16.msra.mxu0 0
          %1450 = vmatprep.subr.bf16.mxu0 0
          %1451 = vmatpush1.bf16.msra.mxu0 0
          %1452 = vmatprep.subr.bf16.mxu0 0
          %1453 = vmatpush1.bf16.msra.mxu0 0
          %1454 = vmatprep.subr.bf16.mxu0 0
          %1455 = vmatpush1.bf16.msra.mxu0 0
          %1456 = vmatprep.subr.bf16.mxu0 0
          %1457 = vmatpush1.bf16.msra.mxu0 0
          %1458 = vmatprep.subr.bf16.mxu0 0
          %1459 = vmatpush1.bf16.msra.mxu0 0
          %1460 = vmatprep.subr.bf16.mxu0 0
          %1461 = vmatpush1.bf16.msra.mxu0 0
          %1462 = vmatprep.subr.bf16.mxu0 0
          %1463 = vmatpush1.bf16.msra.mxu0 0
          %1464 = vmatprep.subr.bf16.mxu0 0
          %1465 = vmatpush1.bf16.msra.mxu0 0
          %1466 = vmatprep.subr.bf16.mxu0 0
          %1467 = vmatpush1.bf16.msra.mxu0 0
          %1468 = vmatprep.subr.bf16.mxu0 0
          %1469 = vmatpush1.bf16.msra.mxu0 0
          %1470 = vmatprep.subr.bf16.mxu0 0
          %1471 = vmatpush1.bf16.msra.mxu0 0
          %1472 = vmatprep.subr.bf16.mxu0 0
          %1473 = vmatpush1.bf16.msra.mxu0 0
          %1474 = vmatprep.mubr.bf16.mxu0 0
          %1475 = vmatmul.mubr.bf16.gmra.mrb[0].mxu0 %v1437
          %v1476 = vpop.f32.mrb[0].mxu0
          %v1477 = vadd.f32 %v1391, %v1476
          %v1478 = vpop.f32.mrb[0].mxu0
          %v1479 = vadd.f32 %v1391, %v1478
          %v1480 = vpop.f32.mrb[0].mxu0
          %v1481 = vadd.f32 %v1396, %v1480
          %v1482 = vpop.f32.mrb[0].mxu0
          %v1483 = vadd.f32 %v1396, %v1482
          %1484 = vmatprep.mubr.bf16.mxu0 0
          %1485 = vmatmul.mubr.bf16.gmra.mrb[0].mxu0 %v1440
          %v1486 = vpop.f32.mrb[0].mxu0
          %v1487 = vadd.f32 %v1401, %v1486
          %v1488 = vpop.f32.mrb[0].mxu0
          %v1489 = vadd.f32 %v1401, %v1488
          %v1490 = vpop.f32.mrb[0].mxu0
          %v1491 = vadd.f32 %v1406, %v1490
          %v1492 = vpop.f32.mrb[0].mxu0
          %v1493 = vadd.f32 %v1406, %v1492
          %1494 = vdwg.mxu0
          %s1495 = sld [smem:[#allocation6]]
          %v1496 = vstv %s1495
          %v1497 = vmul.f32 %v1496, %v1477
          %v1498 = vmul.f32 %v1496, %v1479
          %v1499 = vmul.f32 %v1496, %v1481
          %v1500 = vmul.f32 %v1496, %v1483
          %v1501 = vmul.f32 %v1496, %v1487
          %v1502 = vmul.f32 %v1496, %v1489
          %v1503 = vmul.f32 %v1496, %v1491
          %v1504 = vmul.f32 %v1496, %v1493
          %v1505 = vld [vmem:[%s320] sm:$0xff]
          %v1506 = vld [vmem:[%s320 + $0x8] sm:$0xff]
          %v1507 = vld [vmem:[%s320 + $0x10] sm:$0xff]
          %v1508 = vld [vmem:[%s320 + $0x18] sm:$0xff]
          %v1509 = vld [vmem:[%s320 + $0x20] sm:$0xff]
          %v1510 = vld [vmem:[%s320 + $0x28] sm:$0xff]
          %v1511 = vld [vmem:[%s320 + $0x30] sm:$0xff]
          %v1512 = vld [vmem:[%s320 + $0x38] sm:$0xff]
          %v1513 = vadd.f32 %v1497, %v1505
          %v1514 = vadd.f32 %v1498, %v1506
          %v1515 = vadd.f32 %v1499, %v1507
          %v1516 = vadd.f32 %v1500, %v1508
          %v1517 = vadd.f32 %v1501, %v1509
          %v1518 = vadd.f32 %v1502, %v1510
          %v1519 = vadd.f32 %v1503, %v1511
          %v1520 = vadd.f32 %v1504, %v1512
          %1521 = vst [vmem:[%s363] sm:$0xff] %v1513
          %1522 = vst [vmem:[%s363 + $0x8] sm:$0xff] %v1514
          %1523 = vst [vmem:[%s363 + $0x10] sm:$0xff] %v1515
          %1524 = vst [vmem:[%s363 + $0x18] sm:$0xff] %v1516
          %1525 = vst [vmem:[%s363 + $0x20] sm:$0xff] %v1517
          %1526 = vst [vmem:[%s363 + $0x28] sm:$0xff] %v1518
          %1527 = vst [vmem:[%s363 + $0x30] sm:$0xff] %v1519
          %1528 = vst [vmem:[%s363 + $0x38] sm:$0xff] %v1520
        $region64: #{tpu_custom_call.1} parent=47 // pred_fallthru
          _
        %s1529 = sand.u32 %s216, 1
        %s1530 = scalar_lea.sflag [#allocation9], %s1529
        %s1531 = sand.u32 %s216, 1
        %s1532 = smul.addr %s1531, 64
        %s1533 = scalar_lea.vmem [#allocation12], %s1532
        // Predicated region
        $region65: #{tpu_custom_call.1} parent=47 // pred_check
          %p1534 = pneg %p226
        $region66: #{tpu_custom_call.1} parent=47 // pred_check_branch
          %1536 = sbr.rel (%p1534) target = $region68
        $region67: #{tpu_custom_call.1} parent=47 // pred_region
          %s1537 = smul.u32 2, %s32
          %s1539 = ssub.s32 1024, 1024
          %1540 = vsyncadd %s1530, %s1539
          %s1541 = smul.addr %s31, 8
          %s1542 = sadd.s32 %s1537, %s1541
          %s1543 = smul.addr %s1542, 128
          %s1544 = scalar_lea.hbm %s7, %s1543
          %s1545 = sshll.u32 %s1533, 4
          %s1546 = int_to_ptr.vmem [resolvable:$true] %s1545
          %1551 = dma.vmem_to_hbm [thread:$0]  %s1546, 1024, %s1544, %s1530, 256, 256, 16
        $region68: #{tpu_custom_call.1} parent=47 // pred_fallthru
          _
      $region48: #{tpu_custom_call.1} parent=5 // pred_fallthru
        _
      %p1552 = scmp.le.s32.totalorder 2, %s21
      // Predicated region
      $region69: #{tpu_custom_call.1} parent=5 // pred_check
        %p1553 = pneg %p1552
      $region70: #{tpu_custom_call.1} parent=5 // pred_check_branch
        %1555 = sbr.rel (%p1553) target = $region72
      $region71: #{tpu_custom_call.1} parent=5 // pred_region
        %s1556 = ssub.s32 %s21, 2
        // Predicated region
        $region73: #{tpu_custom_call.1} parent=71 // pred_check
          %p1557 = pneg %p232
        $region74: #{tpu_custom_call.1} parent=71 // pred_check_branch
          %1559 = sbr.rel (%p1557) target = $region76
        $region75: #{tpu_custom_call.1} parent=71 // pred_region
          %s1560 = sand.u32 %s217, 1
          %s1561 = scalar_lea.sflag [#allocation9], %s1560
          %s1562 = sand.u32 %s217, 1
          %s1563 = smul.addr %s1562, 64
          %s1564 = scalar_lea.vmem [#allocation12], %s1563
          %1565 = dma.done %s1561, 1024
        $region76: #{tpu_custom_call.1} parent=71 // pred_fallthru
          _
      $region72: #{tpu_custom_call.1} parent=5 // pred_fallthru
        _
    $region6: #{tpu_custom_call.1} parent=1 // loop_footer
      %s25 = sadd.s32 1, %s21
    $region7: #{tpu_custom_call.1} parent=1 // loop_footer_branch
      %20 = sbr.rel target = $region3
    $region8: #{tpu_custom_call.1} parent=1 // loop_exit
      _
    %1566 = vsyncpa [#allocation8], 1
    %s1567 = scalar_lea.sflag [#allocation8], 1
    %1568 = vsyncpa %s1567, 1
    %1569 = vsyncpa [#allocation11], 1
    %1570 = vsyncpa [#allocation9], 1
    %s1571 = scalar_lea.sflag [#allocation9], 1
    %1572 = vsyncpa %s1571, 1

</llo_original>
